<compile_context>
chip_gen: v6e
topology: v6e:2x2x1
jax: 0.10.0
libtpu: 0.0.40
codegen_flags: <defaults>
</compile_context>

<pallas_src>
import jax
import jax.numpy as jnp
from jax import lax
from jax.experimental import pallas as pl
from jax.experimental.pallas import tpu as pltpu
import numpy as np

INPUT_SIZE = 132   # matches the PyTorch module
D_PAD = 256        # padded feature dim (multiple of 128 lanes); col 132 = 1.0
HIDDEN = 128
FC1_OUT = 64
FC2_OUT = 32
FC_PAD = 128       # lane-dense padding for fc1/fc2/fc3
EPS = 1e-5


def pose_lstm_kernel(x_ref, w_ih_ref, w_hh_ref,
                     fc1_w_ref, fc1_b_ref,
                     fc2_w_ref, fc2_b_ref,
                     fc3_wt_ref, fc3_b_ref,
                     out_ref, xw_ref):
    # x_ref:    [T*B, Dp]  bf16, time-major (rows t*B:(t+1)*B are step t);
    #                       column INPUT_SIZE is 1.0 (bias column).
    # w_ih_ref: [Dp, 4H]   bf16, gate order (i,f,o,g); row INPUT_SIZE = bias.
    # w_hh_ref: [H, 4H]    bf16, gate order (i,f,o,g)
    # fc1_w:    [H, 128]   f32  (bn1 folded, zero-padded 64->128)
    # fc2_w:    [128, 128] f32  (bn2 folded, zero-padded 32->128)
    # fc3_wt:   [1, 128]   f32  (fc3 weight transposed, zero-padded)
    # xw_ref:   [T*B, 4H]  f32  VMEM scratch for the hoisted projection
    TB = x_ref.shape[0]
    H = w_hh_ref.shape[0]
    B = out_ref.shape[0]
    T = TB // B

    # ---- Hoisted input projection (bias folded in): one big bf16 matmul ----
    xw_ref[...] = jnp.dot(x_ref[...], w_ih_ref[...],
                          preferred_element_type=jnp.float32)   # [T*B, 4H]

    # ---- Serial recurrence: one [B,H]x[H,4H] matmul per step ----
    def step(t, carry):
        h, c = carry
        row = pl.multiple_of(t * B, B)
        gates = xw_ref[pl.ds(row, B), :] + jnp.dot(
            h.astype(jnp.bfloat16), w_hh_ref[...],
            preferred_element_type=jnp.float32)                 # [B, 4H] f32
        # gate order (i, f, o, g): one contiguous sigmoid slab + one tanh slab
        sig = jax.nn.sigmoid(gates[:, :3 * H])
        i_g = sig[:, 0 * H:1 * H]
        f_g = sig[:, 1 * H:2 * H]
        o_g = sig[:, 2 * H:3 * H]
        g_g = jnp.tanh(gates[:, 3 * H:])
        c = f_g * c + i_g * g_g
        h = o_g * jnp.tanh(c)
        return h, c

    h0 = jnp.zeros((B, H), jnp.float32)
    c0 = jnp.zeros((B, H), jnp.float32)
    h, _ = lax.fori_loop(0, T, step, (h0, c0), unroll=True)

    # ---- Epilogue (f32, all lane-dense 128-wide; BN folded into fc1/fc2) ----
    # Dropout(0.5) in eval mode = identity.
    y = jnp.maximum(
        jnp.dot(h, fc1_w_ref[...], preferred_element_type=jnp.float32)
        + fc1_b_ref[...], 0.0)                                   # [B, 128]
    y = jnp.maximum(
        jnp.dot(y, fc2_w_ref[...], preferred_element_type=jnp.float32)
        + fc2_b_ref[...], 0.0)                                   # [B, 128]
    # sigmoid(fc3(x)) as VPU multiply + lane reduction (avoids N=1 MXU dot).
    logits = jnp.sum(y * fc3_wt_ref[...], axis=-1, keepdims=True) \
        + fc3_b_ref[...]
    out_ref[...] = jax.nn.sigmoid(logits).astype(out_ref.dtype)


def pose_lstm_forward(x, params):
    """x: [B, T, D] float32.  Returns [B, 1] float32."""
    B, T, D = x.shape
    H = HIDDEN
    assert B % 8 == 0, "batch must be a multiple of 8 sublanes"

    # --- gate permutation (i,f,g,o) -> (i,f,o,g) along the 4H axis ---
    def permute_gates(w):
        return jnp.concatenate(
            [w[..., 0 * H:1 * H], w[..., 1 * H:2 * H],
             w[..., 3 * H:4 * H], w[..., 2 * H:3 * H]], axis=-1)

    w_ih = permute_gates(params["w_ih"])           # [D, 4H]
    w_hh = permute_gates(params["w_hh"])           # [H, 4H]
    b_lstm = permute_gates(params["b_lstm"])[0]    # [4H]

    # Pad W_ih feature dim to D_PAD; write the bias into row D (the "ones"
    # column of x) so the bias add becomes free MXU work.
    w_ih_p = jnp.zeros((D_PAD, 4 * H), jnp.float32)
    w_ih_p = w_ih_p.at[:D, :].set(w_ih)
    w_ih_p = w_ih_p.at[D, :].set(b_lstm)
    w_ih_p = w_ih_p.astype(jnp.bfloat16)
    w_hh_b = w_hh.astype(jnp.bfloat16)

    # Time-major x, zero-pad feature dim, set the bias column to 1, flatten.
    x_tm = jnp.transpose(x, (1, 0, 2))                           # [T, B, D]
    x_tm = jnp.pad(x_tm, ((0, 0), (0, 0), (0, D_PAD - D)))
    x_tm = x_tm.at[:, :, D].set(1.0)
    x_flat = x_tm.reshape(T * B, D_PAD).astype(jnp.bfloat16)

    # Fold bn1 (eval affine) into fc1; pad output 64 -> 128.
    s1 = params["bn1_scale"][0]                                  # [128]
    t1 = params["bn1_shift"][0]                                  # [128]
    fc1_w = params["fc1_w"] * s1[:, None]                        # [128, 64]
    fc1_b = t1 @ params["fc1_w"] + params["fc1_b"][0]            # [64]
    fc1_w = jnp.pad(fc1_w, ((0, 0), (0, FC_PAD - FC1_OUT)))
    fc1_b = jnp.pad(fc1_b, (0, FC_PAD - FC1_OUT)).reshape(1, FC_PAD)

    # Fold bn2 into fc2; pad input 64 -> 128 (zero rows) and output 32 -> 128.
    s2 = params["bn2_scale"][0]                                  # [64]
    t2 = params["bn2_shift"][0]                                  # [64]
    fc2_w = params["fc2_w"] * s2[:, None]                        # [64, 32]
    fc2_b = t2 @ params["fc2_w"] + params["fc2_b"][0]            # [32]
    fc2_w = jnp.pad(fc2_w, ((0, FC_PAD - FC1_OUT), (0, FC_PAD - FC2_OUT)))
    fc2_b = jnp.pad(fc2_b, (0, FC_PAD - FC2_OUT)).reshape(1, FC_PAD)

    fc3_wt = jnp.pad(params["fc3_w"].reshape(1, FC2_OUT),
                     ((0, 0), (0, FC_PAD - FC2_OUT)))            # [1, 128]
    fc3_b = params["fc3_b"]                                      # [1, 1]

    inputs = (x_flat, w_ih_p, w_hh_b,
              fc1_w, fc1_b, fc2_w, fc2_b, fc3_wt, fc3_b)

    flops = (2 * T * B * D_PAD * 4 * H           # hoisted projection (+bias)
             + 2 * T * B * H * 4 * H             # recurrence h @ W_hh
             + 2 * B * (H * FC_PAD + FC_PAD * FC_PAD + FC_PAD))
    transcendentals = 5 * T * B * H + B
    bytes_accessed = sum(int(np.prod(a.shape)) * a.dtype.itemsize
                         for a in inputs) + B * 4

    vmem_spec = pl.BlockSpec(memory_space=pltpu.MemorySpace.VMEM)
    return pl.pallas_call(
        pose_lstm_kernel,
        out_shape=jax.ShapeDtypeStruct((B, 1), jnp.float32),
        in_specs=[vmem_spec] * len(inputs),
        out_specs=vmem_spec,
        scratch_shapes=[pltpu.VMEM((T * B, 4 * H), jnp.float32)],
        cost_estimate=pl.CostEstimate(flops=flops,
                                      transcendentals=transcendentals,
                                      bytes_accessed=bytes_accessed),
    )(*inputs)


def make_params(key):
    """Deterministic parameter init (PyTorch-like uniform scales)."""
    ks = jax.random.split(key, 16)
    u = lambda k, shape, s: jax.random.uniform(k, shape, jnp.float32, -s, s)

    s_lstm = 1.0 / np.sqrt(HIDDEN)
    w_ih = u(ks[0], (INPUT_SIZE, 4 * HIDDEN), s_lstm)
    w_hh = u(ks[1], (HIDDEN, 4 * HIDDEN), s_lstm)
    b_ih = u(ks[2], (4 * HIDDEN,), s_lstm)
    b_hh = u(ks[3], (4 * HIDDEN,), s_lstm)
    b_lstm = (b_ih + b_hh).reshape(1, 4 * HIDDEN)

    g1 = 1.0 + 0.1 * jax.random.normal(ks[4], (HIDDEN,), jnp.float32)
    be1 = 0.1 * jax.random.normal(ks[5], (HIDDEN,), jnp.float32)
    rm1 = 0.1 * jax.random.normal(ks[6], (HIDDEN,), jnp.float32)
    rv1 = 1.0 + 0.1 * jax.random.uniform(ks[7], (HIDDEN,), jnp.float32)
    bn1_scale = (g1 / jnp.sqrt(rv1 + EPS)).reshape(1, HIDDEN)
    bn1_shift = (be1 - rm1 * g1 / jnp.sqrt(rv1 + EPS)).reshape(1, HIDDEN)

    s1 = 1.0 / np.sqrt(HIDDEN)
    fc1_w = u(ks[8], (HIDDEN, FC1_OUT), s1)
    fc1_b = u(ks[9], (FC1_OUT,), s1).reshape(1, FC1_OUT)

    g2 = 1.0 + 0.1 * jax.random.normal(ks[10], (FC1_OUT,), jnp.float32)
    be2 = 0.1 * jax.random.normal(ks[11], (FC1_OUT,), jnp.float32)
    rm2 = 0.1 * jax.random.normal(ks[12], (FC1_OUT,), jnp.float32)
    rv2 = 1.0 + 0.1 * jax.random.uniform(ks[13], (FC1_OUT,), jnp.float32)
    bn2_scale = (g2 / jnp.sqrt(rv2 + EPS)).reshape(1, FC1_OUT)
    bn2_shift = (be2 - rm2 * g2 / jnp.sqrt(rv2 + EPS)).reshape(1, FC1_OUT)

    s2 = 1.0 / np.sqrt(FC1_OUT)
    fc2_w = u(ks[14], (FC1_OUT, FC2_OUT), s2)
    fc2_b = u(ks[15], (FC2_OUT,), s2).reshape(1, FC2_OUT)

    s3 = 1.0 / np.sqrt(FC2_OUT)
    k_a, k_b = jax.random.split(ks[0])
    fc3_w = u(k_a, (FC2_OUT, 1), s3)
    fc3_b = u(k_b, (1,), s3).reshape(1, 1)

    return dict(w_ih=w_ih, w_hh=w_hh, b_lstm=b_lstm,
                bn1_scale=bn1_scale, bn1_shift=bn1_shift,
                fc1_w=fc1_w, fc1_b=fc1_b,
                bn2_scale=bn2_scale, bn2_shift=bn2_shift,
                fc2_w=fc2_w, fc2_b=fc2_b,
                fc3_w=fc3_w, fc3_b=fc3_b)


def reference_forward(x, p):
    """Pure-JAX reference mirroring the kernel's precision choices
    (bf16 MXU operands / bf16 bias for the LSTM; f32 everywhere else),
    with the original PyTorch structure (unfolded BN, gate order i,f,g,o)."""
    B, T, D = x.shape
    H = HIDDEN
    xb = x.astype(jnp.bfloat16)
    w_ih = p["w_ih"].astype(jnp.bfloat16)
    w_hh = p["w_hh"].astype(jnp.bfloat16)
    # Bias is folded through a bf16 W_ih row in the kernel -> bf16-round it.
    bias = p["b_lstm"].astype(jnp.bfloat16).astype(jnp.float32)
    h = jnp.zeros((B, H), jnp.float32)
    c = jnp.zeros((B, H), jnp.float32)
    for t in range(T):
        gates = (jnp.dot(xb[:, t, :], w_ih, preferred_element_type=jnp.float32)
                 + jnp.dot(h.astype(jnp.bfloat16), w_hh,
                           preferred_element_type=jnp.float32)
                 + bias)
        i_g = jax.nn.sigmoid(gates[:, 0 * H:1 * H])
        f_g = jax.nn.sigmoid(gates[:, 1 * H:2 * H])
        g_g = jnp.tanh(gates[:, 2 * H:3 * H])
        o_g = jax.nn.sigmoid(gates[:, 3 * H:4 * H])
        c = f_g * c + i_g * g_g
        h = o_g * jnp.tanh(c)
    y = h * p["bn1_scale"] + p["bn1_shift"]          # bn1 (eval) ; dropout id.
    y = jnp.maximum(
        jnp.dot(y, p["fc1_w"], preferred_element_type=jnp.float32)
        + p["fc1_b"], 0.0)
    y = y * p["bn2_scale"] + p["bn2_shift"]          # bn2 (eval)
    y = jnp.maximum(
        jnp.dot(y, p["fc2_w"], preferred_element_type=jnp.float32)
        + p["fc2_b"], 0.0)
    y = jax.nn.sigmoid(
        jnp.sum(y * p["fc3_w"].reshape(1, FC2_OUT), axis=-1, keepdims=True)
        + p["fc3_b"])
    return y


if __name__ == "__main__":
    key = jax.random.PRNGKey(0)
    k_x, k_p = jax.random.split(key)

    B, T = 8, 8
    x = jax.random.normal(k_x, (B, T, INPUT_SIZE), jnp.float32)
    params = make_params(k_p)

    out = pose_lstm_forward(x, params)
    out = jax.block_until_ready(out)

    ref = jax.block_until_ready(reference_forward(x, params))
    np.testing.assert_allclose(np.asarray(out), np.asarray(ref),
                               rtol=1e-3, atol=1e-3)
    assert out.shape == (B, 1)
    print("KERNEL_OK")
</pallas_src>

<mosaic_0001>
module attributes {stable_mosaic.version = 11 : i64} {
  func.func @pose_lstm_kernel(%arg0: memref<64x256xbf16, #tpu.memory_space<vmem>>, %arg1: memref<256x512xbf16, #tpu.memory_space<vmem>>, %arg2: memref<128x512xbf16, #tpu.memory_space<vmem>>, %arg3: memref<128x128xf32, #tpu.memory_space<vmem>>, %arg4: memref<1x128xf32, #tpu.memory_space<vmem>>, %arg5: memref<128x128xf32, #tpu.memory_space<vmem>>, %arg6: memref<1x128xf32, #tpu.memory_space<vmem>>, %arg7: memref<1x128xf32, #tpu.memory_space<vmem>>, %arg8: memref<1x1xf32, #tpu.memory_space<vmem>>, %arg9: memref<8x1xf32, #tpu.memory_space<vmem>>, %arg10: memref<64x512xf32, #tpu.memory_space<vmem>>) attributes {dimension_semantics = [], scalar_prefetch = 0 : i64, scratch_operands = 1 : i64, tpu.core_type = #tpu.core_type<tc>} {
    %c0 = arith.constant 0 : index
    %c0_0 = arith.constant 0 : index
    %0 = vector.load %arg0[%c0, %c0_0] : memref<64x256xbf16, #tpu.memory_space<vmem>>, vector<64x256xbf16>
    %c0_1 = arith.constant 0 : index
    %c0_2 = arith.constant 0 : index
    %1 = vector.load %arg1[%c0_1, %c0_2] : memref<256x512xbf16, #tpu.memory_space<vmem>>, vector<256x512xbf16>
    %cst = arith.constant dense<0.000000e+00> : vector<64x512xf32>
    %2 = tpu.matmul %0, %1, %cst {dimension_numbers = #tpu.dot_dimension_numbers<[1], [0], [0], [1], [0, 0, 1, 1], [], []>} : vector<64x256xbf16>, vector<256x512xbf16>, vector<64x512xf32> -> vector<64x512xf32>
    %c0_3 = arith.constant 0 : index
    %c0_4 = arith.constant 0 : index
    %3 = vector.load %arg10[%c0_3, %c0_4] : memref<64x512xf32, #tpu.memory_space<vmem>>, vector<64x512xf32>
    tpu.vector_store %arg10[%c0_3, %c0_4], %2 {strides = array<i32>} : memref<64x512xf32, #tpu.memory_space<vmem>>, vector<64x512xf32>,
    %cst_5 = arith.constant 0.000000e+00 : f32
    %4 = vector.broadcast %cst_5 : f32 to vector<8x128xf32>
    %cst_6 = arith.constant 0.000000e+00 : f32
    %5 = vector.broadcast %cst_6 : f32 to vector<8x128xf32>
    %c0_i32 = arith.constant 0 : i32
    %c8_i32 = arith.constant 8 : i32
    %6 = arith.muli %c0_i32, %c8_i32 : i32
    %7 = tpu.assume_multiple %6, 8 : i32
    %8 = arith.index_cast %7 : i32 to index
    %c0_7 = arith.constant 0 : index
    %9 = vector.load %arg10[%8, %c0_7] : memref<64x512xf32, #tpu.memory_space<vmem>>, vector<8x512xf32>
    %10 = arith.truncf %4 : vector<8x128xf32> to vector<8x128xbf16>
    %c0_8 = arith.constant 0 : index
    %c0_9 = arith.constant 0 : index
    %11 = vector.load %arg2[%c0_8, %c0_9] : memref<128x512xbf16, #tpu.memory_space<vmem>>, vector<128x512xbf16>
    %cst_10 = arith.constant dense<0.000000e+00> : vector<8x512xf32>
    %12 = tpu.matmul %10, %11, %cst_10 {dimension_numbers = #tpu.dot_dimension_numbers<[1], [0], [0], [1], [0, 0, 1, 1], [], []>} : vector<8x128xbf16>, vector<128x512xbf16>, vector<8x512xf32> -> vector<8x512xf32>
    %13 = arith.addf %9, %12 : vector<8x512xf32>
    %14 = vector.extract_strided_slice %13 {offsets = [0, 0], sizes = [8, 384], strides = [1, 1]} : vector<8x512xf32> to vector<8x384xf32>
    %15 = arith.negf %14 : vector<8x384xf32>
    %16 = math.exp %15 : vector<8x384xf32>
    %cst_11 = arith.constant 1.000000e+00 : f32
    %17 = vector.broadcast %cst_11 : f32 to vector<8x384xf32>
    %18 = arith.addf %17, %16 : vector<8x384xf32>
    %19 = arith.divf %17, %18 : vector<8x384xf32>
    %20 = vector.extract_strided_slice %19 {offsets = [0, 0], sizes = [8, 128], strides = [1, 1]} : vector<8x384xf32> to vector<8x128xf32>
    %21 = vector.extract_strided_slice %19 {offsets = [0, 128], sizes = [8, 128], strides = [1, 1]} : vector<8x384xf32> to vector<8x128xf32>
    %22 = vector.extract_strided_slice %19 {offsets = [0, 256], sizes = [8, 128], strides = [1, 1]} : vector<8x384xf32> to vector<8x128xf32>
    %23 = vector.extract_strided_slice %13 {offsets = [0, 384], sizes = [8, 128], strides = [1, 1]} : vector<8x512xf32> to vector<8x128xf32>
    %24 = math.tanh %23 : vector<8x128xf32>
    %25 = arith.mulf %21, %5 : vector<8x128xf32>
    %26 = arith.mulf %20, %24 : vector<8x128xf32>
    %27 = arith.addf %25, %26 : vector<8x128xf32>
    %28 = math.tanh %27 : vector<8x128xf32>
    %29 = arith.mulf %22, %28 : vector<8x128xf32>
    %c1_i32 = arith.constant 1 : i32
    %c8_i32_12 = arith.constant 8 : i32
    %30 = arith.muli %c1_i32, %c8_i32_12 : i32
    %31 = tpu.assume_multiple %30, 8 : i32
    %32 = arith.index_cast %31 : i32 to index
    %c0_13 = arith.constant 0 : index
    %33 = vector.load %arg10[%32, %c0_13] : memref<64x512xf32, #tpu.memory_space<vmem>>, vector<8x512xf32>
    %34 = arith.truncf %29 : vector<8x128xf32> to vector<8x128xbf16>
    %c0_14 = arith.constant 0 : index
    %c0_15 = arith.constant 0 : index
    %35 = vector.load %arg2[%c0_14, %c0_15] : memref<128x512xbf16, #tpu.memory_space<vmem>>, vector<128x512xbf16>
    %cst_16 = arith.constant dense<0.000000e+00> : vector<8x512xf32>
    %36 = tpu.matmul %34, %35, %cst_16 {dimension_numbers = #tpu.dot_dimension_numbers<[1], [0], [0], [1], [0, 0, 1, 1], [], []>} : vector<8x128xbf16>, vector<128x512xbf16>, vector<8x512xf32> -> vector<8x512xf32>
    %37 = arith.addf %33, %36 : vector<8x512xf32>
    %38 = vector.extract_strided_slice %37 {offsets = [0, 0], sizes = [8, 384], strides = [1, 1]} : vector<8x512xf32> to vector<8x384xf32>
    %39 = arith.negf %38 : vector<8x384xf32>
    %40 = math.exp %39 : vector<8x384xf32>
    %cst_17 = arith.constant 1.000000e+00 : f32
    %41 = vector.broadcast %cst_17 : f32 to vector<8x384xf32>
    %42 = arith.addf %41, %40 : vector<8x384xf32>
    %43 = arith.divf %41, %42 : vector<8x384xf32>
    %44 = vector.extract_strided_slice %43 {offsets = [0, 0], sizes = [8, 128], strides = [1, 1]} : vector<8x384xf32> to vector<8x128xf32>
    %45 = vector.extract_strided_slice %43 {offsets = [0, 128], sizes = [8, 128], strides = [1, 1]} : vector<8x384xf32> to vector<8x128xf32>
    %46 = vector.extract_strided_slice %43 {offsets = [0, 256], sizes = [8, 128], strides = [1, 1]} : vector<8x384xf32> to vector<8x128xf32>
    %47 = vector.extract_strided_slice %37 {offsets = [0, 384], sizes = [8, 128], strides = [1, 1]} : vector<8x512xf32> to vector<8x128xf32>
    %48 = math.tanh %47 : vector<8x128xf32>
    %49 = arith.mulf %45, %27 : vector<8x128xf32>
    %50 = arith.mulf %44, %48 : vector<8x128xf32>
    %51 = arith.addf %49, %50 : vector<8x128xf32>
    %52 = math.tanh %51 : vector<8x128xf32>
    %53 = arith.mulf %46, %52 : vector<8x128xf32>
    %c2_i32 = arith.constant 2 : i32
    %c8_i32_18 = arith.constant 8 : i32
    %54 = arith.muli %c2_i32, %c8_i32_18 : i32
    %55 = tpu.assume_multiple %54, 8 : i32
    %56 = arith.index_cast %55 : i32 to index
    %c0_19 = arith.constant 0 : index
    %57 = vector.load %arg10[%56, %c0_19] : memref<64x512xf32, #tpu.memory_space<vmem>>, vector<8x512xf32>
    %58 = arith.truncf %53 : vector<8x128xf32> to vector<8x128xbf16>
    %c0_20 = arith.constant 0 : index
    %c0_21 = arith.constant 0 : index
    %59 = vector.load %arg2[%c0_20, %c0_21] : memref<128x512xbf16, #tpu.memory_space<vmem>>, vector<128x512xbf16>
    %cst_22 = arith.constant dense<0.000000e+00> : vector<8x512xf32>
    %60 = tpu.matmul %58, %59, %cst_22 {dimension_numbers = #tpu.dot_dimension_numbers<[1], [0], [0], [1], [0, 0, 1, 1], [], []>} : vector<8x128xbf16>, vector<128x512xbf16>, vector<8x512xf32> -> vector<8x512xf32>
    %61 = arith.addf %57, %60 : vector<8x512xf32>
    %62 = vector.extract_strided_slice %61 {offsets = [0, 0], sizes = [8, 384], strides = [1, 1]} : vector<8x512xf32> to vector<8x384xf32>
    %63 = arith.negf %62 : vector<8x384xf32>
    %64 = math.exp %63 : vector<8x384xf32>
    %cst_23 = arith.constant 1.000000e+00 : f32
    %65 = vector.broadcast %cst_23 : f32 to vector<8x384xf32>
    %66 = arith.addf %65, %64 : vector<8x384xf32>
    %67 = arith.divf %65, %66 : vector<8x384xf32>
    %68 = vector.extract_strided_slice %67 {offsets = [0, 0], sizes = [8, 128], strides = [1, 1]} : vector<8x384xf32> to vector<8x128xf32>
    %69 = vector.extract_strided_slice %67 {offsets = [0, 128], sizes = [8, 128], strides = [1, 1]} : vector<8x384xf32> to vector<8x128xf32>
    %70 = vector.extract_strided_slice %67 {offsets = [0, 256], sizes = [8, 128], strides = [1, 1]} : vector<8x384xf32> to vector<8x128xf32>
    %71 = vector.extract_strided_slice %61 {offsets = [0, 384], sizes = [8, 128], strides = [1, 1]} : vector<8x512xf32> to vector<8x128xf32>
    %72 = math.tanh %71 : vector<8x128xf32>
    %73 = arith.mulf %69, %51 : vector<8x128xf32>
    %74 = arith.mulf %68, %72 : vector<8x128xf32>
    %75 = arith.addf %73, %74 : vector<8x128xf32>
    %76 = math.tanh %75 : vector<8x128xf32>
    %77 = arith.mulf %70, %76 : vector<8x128xf32>
    %c3_i32 = arith.constant 3 : i32
    %c8_i32_24 = arith.constant 8 : i32
    %78 = arith.muli %c3_i32, %c8_i32_24 : i32
    %79 = tpu.assume_multiple %78, 8 : i32
    %80 = arith.index_cast %79 : i32 to index
    %c0_25 = arith.constant 0 : index
    %81 = vector.load %arg10[%80, %c0_25] : memref<64x512xf32, #tpu.memory_space<vmem>>, vector<8x512xf32>
    %82 = arith.truncf %77 : vector<8x128xf32> to vector<8x128xbf16>
    %c0_26 = arith.constant 0 : index
    %c0_27 = arith.constant 0 : index
    %83 = vector.load %arg2[%c0_26, %c0_27] : memref<128x512xbf16, #tpu.memory_space<vmem>>, vector<128x512xbf16>
    %cst_28 = arith.constant dense<0.000000e+00> : vector<8x512xf32>
    %84 = tpu.matmul %82, %83, %cst_28 {dimension_numbers = #tpu.dot_dimension_numbers<[1], [0], [0], [1], [0, 0, 1, 1], [], []>} : vector<8x128xbf16>, vector<128x512xbf16>, vector<8x512xf32> -> vector<8x512xf32>
    %85 = arith.addf %81, %84 : vector<8x512xf32>
    %86 = vector.extract_strided_slice %85 {offsets = [0, 0], sizes = [8, 384], strides = [1, 1]} : vector<8x512xf32> to vector<8x384xf32>
    %87 = arith.negf %86 : vector<8x384xf32>
    %88 = math.exp %87 : vector<8x384xf32>
    %cst_29 = arith.constant 1.000000e+00 : f32
    %89 = vector.broadcast %cst_29 : f32 to vector<8x384xf32>
    %90 = arith.addf %89, %88 : vector<8x384xf32>
    %91 = arith.divf %89, %90 : vector<8x384xf32>
    %92 = vector.extract_strided_slice %91 {offsets = [0, 0], sizes = [8, 128], strides = [1, 1]} : vector<8x384xf32> to vector<8x128xf32>
    %93 = vector.extract_strided_slice %91 {offsets = [0, 128], sizes = [8, 128], strides = [1, 1]} : vector<8x384xf32> to vector<8x128xf32>
    %94 = vector.extract_strided_slice %91 {offsets = [0, 256], sizes = [8, 128], strides = [1, 1]} : vector<8x384xf32> to vector<8x128xf32>
    %95 = vector.extract_strided_slice %85 {offsets = [0, 384], sizes = [8, 128], strides = [1, 1]} : vector<8x512xf32> to vector<8x128xf32>
    %96 = math.tanh %95 : vector<8x128xf32>
    %97 = arith.mulf %93, %75 : vector<8x128xf32>
    %98 = arith.mulf %92, %96 : vector<8x128xf32>
    %99 = arith.addf %97, %98 : vector<8x128xf32>
    %100 = math.tanh %99 : vector<8x128xf32>
    %101 = arith.mulf %94, %100 : vector<8x128xf32>
    %c4_i32 = arith.constant 4 : i32
    %c8_i32_30 = arith.constant 8 : i32
    %102 = arith.muli %c4_i32, %c8_i32_30 : i32
    %103 = tpu.assume_multiple %102, 8 : i32
    %104 = arith.index_cast %103 : i32 to index
    %c0_31 = arith.constant 0 : index
    %105 = vector.load %arg10[%104, %c0_31] : memref<64x512xf32, #tpu.memory_space<vmem>>, vector<8x512xf32>
    %106 = arith.truncf %101 : vector<8x128xf32> to vector<8x128xbf16>
    %c0_32 = arith.constant 0 : index
    %c0_33 = arith.constant 0 : index
    %107 = vector.load %arg2[%c0_32, %c0_33] : memref<128x512xbf16, #tpu.memory_space<vmem>>, vector<128x512xbf16>
    %cst_34 = arith.constant dense<0.000000e+00> : vector<8x512xf32>
    %108 = tpu.matmul %106, %107, %cst_34 {dimension_numbers = #tpu.dot_dimension_numbers<[1], [0], [0], [1], [0, 0, 1, 1], [], []>} : vector<8x128xbf16>, vector<128x512xbf16>, vector<8x512xf32> -> vector<8x512xf32>
    %109 = arith.addf %105, %108 : vector<8x512xf32>
    %110 = vector.extract_strided_slice %109 {offsets = [0, 0], sizes = [8, 384], strides = [1, 1]} : vector<8x512xf32> to vector<8x384xf32>
    %111 = arith.negf %110 : vector<8x384xf32>
    %112 = math.exp %111 : vector<8x384xf32>
    %cst_35 = arith.constant 1.000000e+00 : f32
    %113 = vector.broadcast %cst_35 : f32 to vector<8x384xf32>
    %114 = arith.addf %113, %112 : vector<8x384xf32>
    %115 = arith.divf %113, %114 : vector<8x384xf32>
    %116 = vector.extract_strided_slice %115 {offsets = [0, 0], sizes = [8, 128], strides = [1, 1]} : vector<8x384xf32> to vector<8x128xf32>
    %117 = vector.extract_strided_slice %115 {offsets = [0, 128], sizes = [8, 128], strides = [1, 1]} : vector<8x384xf32> to vector<8x128xf32>
    %118 = vector.extract_strided_slice %115 {offsets = [0, 256], sizes = [8, 128], strides = [1, 1]} : vector<8x384xf32> to vector<8x128xf32>
    %119 = vector.extract_strided_slice %109 {offsets = [0, 384], sizes = [8, 128], strides = [1, 1]} : vector<8x512xf32> to vector<8x128xf32>
    %120 = math.tanh %119 : vector<8x128xf32>
    %121 = arith.mulf %117, %99 : vector<8x128xf32>
    %122 = arith.mulf %116, %120 : vector<8x128xf32>
    %123 = arith.addf %121, %122 : vector<8x128xf32>
    %124 = math.tanh %123 : vector<8x128xf32>
    %125 = arith.mulf %118, %124 : vector<8x128xf32>
    %c5_i32 = arith.constant 5 : i32
    %c8_i32_36 = arith.constant 8 : i32
    %126 = arith.muli %c5_i32, %c8_i32_36 : i32
    %127 = tpu.assume_multiple %126, 8 : i32
    %128 = arith.index_cast %127 : i32 to index
    %c0_37 = arith.constant 0 : index
    %129 = vector.load %arg10[%128, %c0_37] : memref<64x512xf32, #tpu.memory_space<vmem>>, vector<8x512xf32>
    %130 = arith.truncf %125 : vector<8x128xf32> to vector<8x128xbf16>
    %c0_38 = arith.constant 0 : index
    %c0_39 = arith.constant 0 : index
    %131 = vector.load %arg2[%c0_38, %c0_39] : memref<128x512xbf16, #tpu.memory_space<vmem>>, vector<128x512xbf16>
    %cst_40 = arith.constant dense<0.000000e+00> : vector<8x512xf32>
    %132 = tpu.matmul %130, %131, %cst_40 {dimension_numbers = #tpu.dot_dimension_numbers<[1], [0], [0], [1], [0, 0, 1, 1], [], []>} : vector<8x128xbf16>, vector<128x512xbf16>, vector<8x512xf32> -> vector<8x512xf32>
    %133 = arith.addf %129, %132 : vector<8x512xf32>
    %134 = vector.extract_strided_slice %133 {offsets = [0, 0], sizes = [8, 384], strides = [1, 1]} : vector<8x512xf32> to vector<8x384xf32>
    %135 = arith.negf %134 : vector<8x384xf32>
    %136 = math.exp %135 : vector<8x384xf32>
    %cst_41 = arith.constant 1.000000e+00 : f32
    %137 = vector.broadcast %cst_41 : f32 to vector<8x384xf32>
    %138 = arith.addf %137, %136 : vector<8x384xf32>
    %139 = arith.divf %137, %138 : vector<8x384xf32>
    %140 = vector.extract_strided_slice %139 {offsets = [0, 0], sizes = [8, 128], strides = [1, 1]} : vector<8x384xf32> to vector<8x128xf32>
    %141 = vector.extract_strided_slice %139 {offsets = [0, 128], sizes = [8, 128], strides = [1, 1]} : vector<8x384xf32> to vector<8x128xf32>
    %142 = vector.extract_strided_slice %139 {offsets = [0, 256], sizes = [8, 128], strides = [1, 1]} : vector<8x384xf32> to vector<8x128xf32>
    %143 = vector.extract_strided_slice %133 {offsets = [0, 384], sizes = [8, 128], strides = [1, 1]} : vector<8x512xf32> to vector<8x128xf32>
    %144 = math.tanh %143 : vector<8x128xf32>
    %145 = arith.mulf %141, %123 : vector<8x128xf32>
    %146 = arith.mulf %140, %144 : vector<8x128xf32>
    %147 = arith.addf %145, %146 : vector<8x128xf32>
    %148 = math.tanh %147 : vector<8x128xf32>
    %149 = arith.mulf %142, %148 : vector<8x128xf32>
    %c6_i32 = arith.constant 6 : i32
    %c8_i32_42 = arith.constant 8 : i32
    %150 = arith.muli %c6_i32, %c8_i32_42 : i32
    %151 = tpu.assume_multiple %150, 8 : i32
    %152 = arith.index_cast %151 : i32 to index
    %c0_43 = arith.constant 0 : index
    %153 = vector.load %arg10[%152, %c0_43] : memref<64x512xf32, #tpu.memory_space<vmem>>, vector<8x512xf32>
    %154 = arith.truncf %149 : vector<8x128xf32> to vector<8x128xbf16>
    %c0_44 = arith.constant 0 : index
    %c0_45 = arith.constant 0 : index
    %155 = vector.load %arg2[%c0_44, %c0_45] : memref<128x512xbf16, #tpu.memory_space<vmem>>, vector<128x512xbf16>
    %cst_46 = arith.constant dense<0.000000e+00> : vector<8x512xf32>
    %156 = tpu.matmul %154, %155, %cst_46 {dimension_numbers = #tpu.dot_dimension_numbers<[1], [0], [0], [1], [0, 0, 1, 1], [], []>} : vector<8x128xbf16>, vector<128x512xbf16>, vector<8x512xf32> -> vector<8x512xf32>
    %157 = arith.addf %153, %156 : vector<8x512xf32>
    %158 = vector.extract_strided_slice %157 {offsets = [0, 0], sizes = [8, 384], strides = [1, 1]} : vector<8x512xf32> to vector<8x384xf32>
    %159 = arith.negf %158 : vector<8x384xf32>
    %160 = math.exp %159 : vector<8x384xf32>
    %cst_47 = arith.constant 1.000000e+00 : f32
    %161 = vector.broadcast %cst_47 : f32 to vector<8x384xf32>
    %162 = arith.addf %161, %160 : vector<8x384xf32>
    %163 = arith.divf %161, %162 : vector<8x384xf32>
    %164 = vector.extract_strided_slice %163 {offsets = [0, 0], sizes = [8, 128], strides = [1, 1]} : vector<8x384xf32> to vector<8x128xf32>
    %165 = vector.extract_strided_slice %163 {offsets = [0, 128], sizes = [8, 128], strides = [1, 1]} : vector<8x384xf32> to vector<8x128xf32>
    %166 = vector.extract_strided_slice %163 {offsets = [0, 256], sizes = [8, 128], strides = [1, 1]} : vector<8x384xf32> to vector<8x128xf32>
    %167 = vector.extract_strided_slice %157 {offsets = [0, 384], sizes = [8, 128], strides = [1, 1]} : vector<8x512xf32> to vector<8x128xf32>
    %168 = math.tanh %167 : vector<8x128xf32>
    %169 = arith.mulf %165, %147 : vector<8x128xf32>
    %170 = arith.mulf %164, %168 : vector<8x128xf32>
    %171 = arith.addf %169, %170 : vector<8x128xf32>
    %172 = math.tanh %171 : vector<8x128xf32>
    %173 = arith.mulf %166, %172 : vector<8x128xf32>
    %c7_i32 = arith.constant 7 : i32
    %c8_i32_48 = arith.constant 8 : i32
    %174 = arith.muli %c7_i32, %c8_i32_48 : i32
    %175 = tpu.assume_multiple %174, 8 : i32
    %176 = arith.index_cast %175 : i32 to index
    %c0_49 = arith.constant 0 : index
    %177 = vector.load %arg10[%176, %c0_49] : memref<64x512xf32, #tpu.memory_space<vmem>>, vector<8x512xf32>
    %178 = arith.truncf %173 : vector<8x128xf32> to vector<8x128xbf16>
    %c0_50 = arith.constant 0 : index
    %c0_51 = arith.constant 0 : index
    %179 = vector.load %arg2[%c0_50, %c0_51] : memref<128x512xbf16, #tpu.memory_space<vmem>>, vector<128x512xbf16>
    %cst_52 = arith.constant dense<0.000000e+00> : vector<8x512xf32>
    %180 = tpu.matmul %178, %179, %cst_52 {dimension_numbers = #tpu.dot_dimension_numbers<[1], [0], [0], [1], [0, 0, 1, 1], [], []>} : vector<8x128xbf16>, vector<128x512xbf16>, vector<8x512xf32> -> vector<8x512xf32>
    %181 = arith.addf %177, %180 : vector<8x512xf32>
    %182 = vector.extract_strided_slice %181 {offsets = [0, 0], sizes = [8, 384], strides = [1, 1]} : vector<8x512xf32> to vector<8x384xf32>
    %183 = arith.negf %182 : vector<8x384xf32>
    %184 = math.exp %183 : vector<8x384xf32>
    %cst_53 = arith.constant 1.000000e+00 : f32
    %185 = vector.broadcast %cst_53 : f32 to vector<8x384xf32>
    %186 = arith.addf %185, %184 : vector<8x384xf32>
    %187 = arith.divf %185, %186 : vector<8x384xf32>
    %188 = vector.extract_strided_slice %187 {offsets = [0, 0], sizes = [8, 128], strides = [1, 1]} : vector<8x384xf32> to vector<8x128xf32>
    %189 = vector.extract_strided_slice %187 {offsets = [0, 128], sizes = [8, 128], strides = [1, 1]} : vector<8x384xf32> to vector<8x128xf32>
    %190 = vector.extract_strided_slice %187 {offsets = [0, 256], sizes = [8, 128], strides = [1, 1]} : vector<8x384xf32> to vector<8x128xf32>
    %191 = vector.extract_strided_slice %181 {offsets = [0, 384], sizes = [8, 128], strides = [1, 1]} : vector<8x512xf32> to vector<8x128xf32>
    %192 = math.tanh %191 : vector<8x128xf32>
    %193 = arith.mulf %189, %171 : vector<8x128xf32>
    %194 = arith.mulf %188, %192 : vector<8x128xf32>
    %195 = arith.addf %193, %194 : vector<8x128xf32>
    %196 = math.tanh %195 : vector<8x128xf32>
    %197 = arith.mulf %190, %196 : vector<8x128xf32>
    %c8_i32_54 = arith.constant 8 : i32
    %c0_55 = arith.constant 0 : index
    %c0_56 = arith.constant 0 : index
    %198 = vector.load %arg3[%c0_55, %c0_56] : memref<128x128xf32, #tpu.memory_space<vmem>>, vector<128x128xf32>
    %cst_57 = arith.constant dense<0.000000e+00> : vector<8x128xf32>
    %199 = tpu.matmul %197, %198, %cst_57 {dimension_numbers = #tpu.dot_dimension_numbers<[1], [0], [0], [1], [0, 0, 1, 1], [], []>} : vector<8x128xf32>, vector<128x128xf32>, vector<8x128xf32> -> vector<8x128xf32>
    %c0_58 = arith.constant 0 : index
    %c0_59 = arith.constant 0 : index
    %200 = vector.load %arg4[%c0_58, %c0_59] : memref<1x128xf32, #tpu.memory_space<vmem>>, vector<1x128xf32>
    %201 = vector.broadcast %200 : vector<1x128xf32> to vector<8x128xf32>
    %202 = arith.addf %199, %201 : vector<8x128xf32>
    %cst_60 = arith.constant 0.000000e+00 : f32
    %203 = vector.broadcast %cst_60 : f32 to vector<8x128xf32>
    %204 = arith.maximumf %202, %203 : vector<8x128xf32>
    %c0_61 = arith.constant 0 : index
    %c0_62 = arith.constant 0 : index
    %205 = vector.load %arg5[%c0_61, %c0_62] : memref<128x128xf32, #tpu.memory_space<vmem>>, vector<128x128xf32>
    %cst_63 = arith.constant dense<0.000000e+00> : vector<8x128xf32>
    %206 = tpu.matmul %204, %205, %cst_63 {dimension_numbers = #tpu.dot_dimension_numbers<[1], [0], [0], [1], [0, 0, 1, 1], [], []>} : vector<8x128xf32>, vector<128x128xf32>, vector<8x128xf32> -> vector<8x128xf32>
    %c0_64 = arith.constant 0 : index
    %c0_65 = arith.constant 0 : index
    %207 = vector.load %arg6[%c0_64, %c0_65] : memref<1x128xf32, #tpu.memory_space<vmem>>, vector<1x128xf32>
    %208 = vector.broadcast %207 : vector<1x128xf32> to vector<8x128xf32>
    %209 = arith.addf %206, %208 : vector<8x128xf32>
    %cst_66 = arith.constant 0.000000e+00 : f32
    %210 = vector.broadcast %cst_66 : f32 to vector<8x128xf32>
    %211 = arith.maximumf %209, %210 : vector<8x128xf32>
    %c0_67 = arith.constant 0 : index
    %c0_68 = arith.constant 0 : index
    %212 = vector.load %arg7[%c0_67, %c0_68] : memref<1x128xf32, #tpu.memory_space<vmem>>, vector<1x128xf32>
    %213 = vector.broadcast %212 : vector<1x128xf32> to vector<8x128xf32>
    %214 = arith.mulf %211, %213 : vector<8x128xf32>
    %cst_69 = arith.constant dense<0.000000e+00> : vector<8xf32>
    %215 = vector.multi_reduction <add>, %214, %cst_69 [1] : vector<8x128xf32> to vector<8xf32>
    %216 = vector.shape_cast %215 : vector<8xf32> to vector<8x1xf32>
    %c0_70 = arith.constant 0 : index
    %c0_71 = arith.constant 0 : index
    %217 = vector.load %arg8[%c0_70, %c0_71] : memref<1x1xf32, #tpu.memory_space<vmem>>, vector<1x1xf32>
    %218 = vector.broadcast %217 : vector<1x1xf32> to vector<8x1xf32>
    %219 = arith.addf %216, %218 : vector<8x1xf32>
    %220 = arith.negf %219 : vector<8x1xf32>
    %221 = math.exp %220 : vector<8x1xf32>
    %cst_72 = arith.constant 1.000000e+00 : f32
    %222 = vector.broadcast %cst_72 : f32 to vector<8x1xf32>
    %223 = arith.addf %222, %221 : vector<8x1xf32>
    %224 = arith.divf %222, %223 : vector<8x1xf32>
    %c0_73 = arith.constant 0 : index
    %c0_74 = arith.constant 0 : index
    %225 = vector.load %arg9[%c0_73, %c0_74] : memref<8x1xf32, #tpu.memory_space<vmem>>, vector<8x1xf32>
    tpu.vector_store %arg9[%c0_73, %c0_74], %224 {strides = array<i32>} : memref<8x1xf32, #tpu.memory_space<vmem>>, vector<8x1xf32>,
    return
  }
}

</mosaic_0001>

<llo_original>
// kernel: tpu_custom_call.1
$region0: #{tpu_custom_call.1}
  #allocation0 [shape = 'u32[]', space=smem, size = 0x4, offset = 0x4, fixed_abs, tag = 'smem constant byte address 0x4 - core index']
  #allocation1 [shape = 'u32[144,128]{1,0:T(1,128)}', space=vmem, size = 0x12000, scoped, tag = 'internal scratch']
  #allocation2 [shape = 'f32[64,512]{1,0:T(8,128)}', space=vmem, size = 0x20000, scoped, tag = 'scratch operand']
  #allocation3 [shape = 'f32[1,1]{1,0:T(1,128)S(1)}', space=vmem, size = 0x200, scoped, tag = 'scoped memory for tpu_custom_call.1']
  %s0 = inlined_call_operand.hbm [shape: bf16[64,256], index: 0, kind: input, shape index: {}]
  %s1 = inlined_call_operand.hbm [shape: bf16[256,512], index: 1, kind: input, shape index: {}]
  %s2 = inlined_call_operand.hbm [shape: bf16[128,512], index: 2, kind: input, shape index: {}]
  %s3 = inlined_call_operand.hbm [shape: f32[128,128], index: 3, kind: input, shape index: {}]
  %s4 = inlined_call_operand.vmem [shape: f32[1,128], index: 4, kind: input, shape index: {}]
  %s5 = inlined_call_operand.hbm [shape: f32[128,128], index: 5, kind: input, shape index: {}]
  %s6 = inlined_call_operand.vmem [shape: f32[1,128], index: 6, kind: input, shape index: {}]
  %s7 = inlined_call_operand.vmem [shape: f32[1,128], index: 7, kind: input, shape index: {}]
  %s8 = inlined_call_operand.<no memory space> [shape: f32[1,1], index: 8, kind: input, shape index: {}]
  %s9 = inlined_call_operand.vmem [shape: f32[8,1], index: 9, kind: output, shape index: {}]
  %s10 = sld [smem:[#allocation0]]
  $region66: #{tpu_custom_call.1} parent=0
    _
  %s12 = ssub.s32 1, %s10
  %s13 = scalar_select 0, %s12, %s10
  %v14 = vstv %s8
  %15 = vst [vmem:[#allocation3] sm:$0x1] %v14
  $region1: #{tpu_custom_call.1} parent=0
    #allocation4 [shape = 'u8[32768]{0}', space=vmem, size = 0x8000, scoped, tag = 'input window, operand 0, single buffered']
    #allocation5 [shape = 's32[1]{0}', space=sflag, size = 0x4, scoped, tag = 'scoped memory for tpu_custom_call.1']
    #allocation6 [shape = 'u8[262144]{0}', space=vmem, size = 0x40000, scoped, tag = 'input window, operand 1, single buffered']
    #allocation7 [shape = 's32[1]{0}', space=sflag, size = 0x4, scoped, tag = 'scoped memory for tpu_custom_call.1']
    #allocation8 [shape = 'u8[131072]{0}', space=vmem, size = 0x20000, scoped, tag = 'input window, operand 2, single buffered']
    #allocation9 [shape = 'u8[65536]{0}', space=vmem, size = 0x10000, scoped, tag = 'input window, operand 3, single buffered']
    #allocation10 [shape = 's32[1]{0}', space=sflag, size = 0x4, scoped, tag = 'scoped memory for tpu_custom_call.1']
    #allocation11 [shape = 'u8[65536]{0}', space=vmem, size = 0x10000, scoped, tag = 'input window, operand 5, single buffered']
    %16 = vsyncpa [#allocation5], 0
    %17 = vsyncpa [#allocation7], 0
    %18 = vsyncpa [#allocation10], 0
    // Predicated region
    $region2: #{tpu_custom_call.1} parent=1 // pred_check
      _
    $region3: #{tpu_custom_call.1} parent=1 // pred_check_branch
      %20 = sbr.rel (0) target = $region5
    $region4: #{tpu_custom_call.1} parent=1 // pred_region
      %s22 = ssub.s32 1024, 1024
      %23 = vsyncadd [#allocation5], %s22
      %s24 = sshll.u32 [#allocation4], 4
      %s25 = int_to_ptr.vmem [resolvable:$true] %s24
      %30 = dma.hbm_to_vmem [thread:$0]  %s0, 1024, %s25, [#allocation5], 128, 128, 8
    $region5: #{tpu_custom_call.1} parent=1 // pred_fallthru
      _
    // Predicated region
    $region6: #{tpu_custom_call.1} parent=1 // pred_check
      _
    $region7: #{tpu_custom_call.1} parent=1 // pred_check_branch
      %32 = sbr.rel (0) target = $region9
    $region8: #{tpu_custom_call.1} parent=1 // pred_region
      %s34 = ssub.s32 8192, 8192
      %35 = vsyncadd [#allocation7], %s34
      %s36 = sshll.u32 [#allocation6], 4
      %s37 = int_to_ptr.vmem [resolvable:$true] %s36
      %42 = dma.hbm_to_vmem [thread:$0]  %s1, 8192, %s37, [#allocation7], 256, 256, 16
    $region9: #{tpu_custom_call.1} parent=1 // pred_fallthru
      _
    // Predicated region
    $region10: #{tpu_custom_call.1} parent=1 // pred_check
      _
    $region11: #{tpu_custom_call.1} parent=1 // pred_check_branch
      %44 = sbr.rel (0) target = $region13
    $region12: #{tpu_custom_call.1} parent=1 // pred_region
      %s46 = ssub.s32 4096, 4096
      %47 = vsyncadd [#allocation7], %s46
      %s48 = sshll.u32 [#allocation8], 4
      %s49 = int_to_ptr.vmem [resolvable:$true] %s48
      %54 = dma.hbm_to_vmem [thread:$0]  %s2, 4096, %s49, [#allocation7], 256, 256, 16
    $region13: #{tpu_custom_call.1} parent=1 // pred_fallthru
      _
    // Predicated region
    $region14: #{tpu_custom_call.1} parent=1 // pred_check
      _
    $region15: #{tpu_custom_call.1} parent=1 // pred_check_branch
      %56 = sbr.rel (0) target = $region17
    $region16: #{tpu_custom_call.1} parent=1 // pred_region
      %s58 = ssub.s32 2048, 2048
      %59 = vsyncadd [#allocation10], %s58
      %s60 = sshll.u32 [#allocation9], 4
      %s61 = int_to_ptr.vmem [resolvable:$true] %s60
      %66 = dma.hbm_to_vmem [thread:$0]  %s3, 2048, %s61, [#allocation10], 128, 128, 8
    $region17: #{tpu_custom_call.1} parent=1 // pred_fallthru
      _
    // Predicated region
    $region18: #{tpu_custom_call.1} parent=1 // pred_check
      _
    $region19: #{tpu_custom_call.1} parent=1 // pred_check_branch
      %68 = sbr.rel (0) target = $region21
    $region20: #{tpu_custom_call.1} parent=1 // pred_region
      _
    $region21: #{tpu_custom_call.1} parent=1 // pred_fallthru
      _
    // Predicated region
    $region22: #{tpu_custom_call.1} parent=1 // pred_check
      _
    $region23: #{tpu_custom_call.1} parent=1 // pred_check_branch
      %70 = sbr.rel (0) target = $region25
    $region24: #{tpu_custom_call.1} parent=1 // pred_region
      %s72 = ssub.s32 2048, 2048
      %73 = vsyncadd [#allocation10], %s72
      %s74 = sshll.u32 [#allocation11], 4
      %s75 = int_to_ptr.vmem [resolvable:$true] %s74
      %80 = dma.hbm_to_vmem [thread:$0]  %s5, 2048, %s75, [#allocation10], 128, 128, 8
    $region25: #{tpu_custom_call.1} parent=1 // pred_fallthru
      _
    // Predicated region
    $region26: #{tpu_custom_call.1} parent=1 // pred_check
      _
    $region27: #{tpu_custom_call.1} parent=1 // pred_check_branch
      %82 = sbr.rel (0) target = $region29
    $region28: #{tpu_custom_call.1} parent=1 // pred_region
      _
    $region29: #{tpu_custom_call.1} parent=1 // pred_fallthru
      _
    // Predicated region
    $region30: #{tpu_custom_call.1} parent=1 // pred_check
      _
    $region31: #{tpu_custom_call.1} parent=1 // pred_check_branch
      %84 = sbr.rel (0) target = $region33
    $region32: #{tpu_custom_call.1} parent=1 // pred_region
      _
    $region33: #{tpu_custom_call.1} parent=1 // pred_fallthru
      _
    // Predicated region
    $region34: #{tpu_custom_call.1} parent=1 // pred_check
      _
    $region35: #{tpu_custom_call.1} parent=1 // pred_check_branch
      %86 = sbr.rel (0) target = $region37
    $region36: #{tpu_custom_call.1} parent=1 // pred_region
      _
    $region37: #{tpu_custom_call.1} parent=1 // pred_fallthru
      _
    // Predicated region
    $region38: #{tpu_custom_call.1} parent=1 // pred_check
      _
    $region39: #{tpu_custom_call.1} parent=1 // pred_check_branch
      %88 = sbr.rel (0) target = $region41
    $region40: #{tpu_custom_call.1} parent=1 // pred_region
      %89 = dma.done [#allocation5], 1024
    $region41: #{tpu_custom_call.1} parent=1 // pred_fallthru
      _
    // Predicated region
    $region42: #{tpu_custom_call.1} parent=1 // pred_check
      _
    $region43: #{tpu_custom_call.1} parent=1 // pred_check_branch
      %91 = sbr.rel (0) target = $region45
    $region44: #{tpu_custom_call.1} parent=1 // pred_region
      %92 = dma.done [#allocation7], 8192
    $region45: #{tpu_custom_call.1} parent=1 // pred_fallthru
      _
    // Predicated region
    $region46: #{tpu_custom_call.1} parent=1 // pred_check
      _
    $region47: #{tpu_custom_call.1} parent=1 // pred_check_branch
      %94 = sbr.rel (0) target = $region49
    $region48: #{tpu_custom_call.1} parent=1 // pred_region
      %95 = dma.done [#allocation7], 4096
    $region49: #{tpu_custom_call.1} parent=1 // pred_fallthru
      _
    // Predicated region
    $region50: #{tpu_custom_call.1} parent=1 // pred_check
      _
    $region51: #{tpu_custom_call.1} parent=1 // pred_check_branch
      %97 = sbr.rel (0) target = $region53
    $region52: #{tpu_custom_call.1} parent=1 // pred_region
      %98 = dma.done [#allocation10], 2048
    $region53: #{tpu_custom_call.1} parent=1 // pred_fallthru
      _
    // Predicated region
    $region54: #{tpu_custom_call.1} parent=1 // pred_check
      _
    $region55: #{tpu_custom_call.1} parent=1 // pred_check_branch
      %100 = sbr.rel (0) target = $region57
    $region56: #{tpu_custom_call.1} parent=1 // pred_region
      %101 = dma.done [#allocation10], 2048
    $region57: #{tpu_custom_call.1} parent=1 // pred_fallthru
      _
    %v103 = vld [vmem:[#allocation4] sm:$0xff]
    %v104 = vld [vmem:[#allocation4 + $0x8] sm:$0xff]
    %v105 = vld [vmem:[#allocation4 + $0x10] sm:$0xff]
    %v106 = vld [vmem:[#allocation4 + $0x18] sm:$0xff]
    %v107 = vld [vmem:[#allocation4 + $0x20] sm:$0xff]
    %v108 = vld [vmem:[#allocation4 + $0x28] sm:$0xff]
    %v109 = vld [vmem:[#allocation4 + $0x30] sm:$0xff]
    %v110 = vld [vmem:[#allocation4 + $0x38] sm:$0xff]
    %v111 = vld [vmem:[#allocation6] sm:$0xff]
    %v112 = vld [vmem:[#allocation6 + $0x8] sm:$0xff]
    %v113 = vld [vmem:[#allocation6 + $0x10] sm:$0xff]
    %v114 = vld [vmem:[#allocation6 + $0x18] sm:$0xff]
    %v115 = vld [vmem:[#allocation6 + $0x20] sm:$0xff]
    %v116 = vld [vmem:[#allocation6 + $0x28] sm:$0xff]
    %v117 = vld [vmem:[#allocation6 + $0x30] sm:$0xff]
    %v118 = vld [vmem:[#allocation6 + $0x38] sm:$0xff]
    %v119 = vld [vmem:[#allocation6 + $0x40] sm:$0xff]
    %v120 = vld [vmem:[#allocation6 + $0x48] sm:$0xff]
    %v121 = vld [vmem:[#allocation6 + $0x50] sm:$0xff]
    %v122 = vld [vmem:[#allocation6 + $0x58] sm:$0xff]
    %v123 = vld [vmem:[#allocation6 + $0x60] sm:$0xff]
    %v124 = vld [vmem:[#allocation6 + $0x68] sm:$0xff]
    %v125 = vld [vmem:[#allocation6 + $0x70] sm:$0xff]
    %v126 = vld [vmem:[#allocation6 + $0x78] sm:$0xff]
    %v127 = vld [vmem:[#allocation6 + $0x80] sm:$0xff]
    %v128 = vld [vmem:[#allocation6 + $0x88] sm:$0xff]
    %v129 = vld [vmem:[#allocation6 + $0x90] sm:$0xff]
    %v130 = vld [vmem:[#allocation6 + $0x98] sm:$0xff]
    %v131 = vld [vmem:[#allocation6 + $0xa0] sm:$0xff]
    %v132 = vld [vmem:[#allocation6 + $0xa8] sm:$0xff]
    %v133 = vld [vmem:[#allocation6 + $0xb0] sm:$0xff]
    %v134 = vld [vmem:[#allocation6 + $0xb8] sm:$0xff]
    %v135 = vld [vmem:[#allocation6 + $0xc0] sm:$0xff]
    %v136 = vld [vmem:[#allocation6 + $0xc8] sm:$0xff]
    %v137 = vld [vmem:[#allocation6 + $0xd0] sm:$0xff]
    %v138 = vld [vmem:[#allocation6 + $0xd8] sm:$0xff]
    %v139 = vld [vmem:[#allocation6 + $0xe0] sm:$0xff]
    %v140 = vld [vmem:[#allocation6 + $0xe8] sm:$0xff]
    %v141 = vld [vmem:[#allocation6 + $0xf0] sm:$0xff]
    %v142 = vld [vmem:[#allocation6 + $0xf8] sm:$0xff]
    %v143 = vld [vmem:[#allocation6 + $0x100] sm:$0xff]
    %v144 = vld [vmem:[#allocation6 + $0x108] sm:$0xff]
    %v145 = vld [vmem:[#allocation6 + $0x110] sm:$0xff]
    %v146 = vld [vmem:[#allocation6 + $0x118] sm:$0xff]
    %v147 = vld [vmem:[#allocation6 + $0x120] sm:$0xff]
    %v148 = vld [vmem:[#allocation6 + $0x128] sm:$0xff]
    %v149 = vld [vmem:[#allocation6 + $0x130] sm:$0xff]
    %v150 = vld [vmem:[#allocation6 + $0x138] sm:$0xff]
    %v151 = vld [vmem:[#allocation6 + $0x140] sm:$0xff]
    %v152 = vld [vmem:[#allocation6 + $0x148] sm:$0xff]
    %v153 = vld [vmem:[#allocation6 + $0x150] sm:$0xff]
    %v154 = vld [vmem:[#allocation6 + $0x158] sm:$0xff]
    %v155 = vld [vmem:[#allocation6 + $0x160] sm:$0xff]
    %v156 = vld [vmem:[#allocation6 + $0x168] sm:$0xff]
    %v157 = vld [vmem:[#allocation6 + $0x170] sm:$0xff]
    %v158 = vld [vmem:[#allocation6 + $0x178] sm:$0xff]
    %v159 = vld [vmem:[#allocation6 + $0x180] sm:$0xff]
    %v160 = vld [vmem:[#allocation6 + $0x188] sm:$0xff]
    %v161 = vld [vmem:[#allocation6 + $0x190] sm:$0xff]
    %v162 = vld [vmem:[#allocation6 + $0x198] sm:$0xff]
    %v163 = vld [vmem:[#allocation6 + $0x1a0] sm:$0xff]
    %v164 = vld [vmem:[#allocation6 + $0x1a8] sm:$0xff]
    %v165 = vld [vmem:[#allocation6 + $0x1b0] sm:$0xff]
    %v166 = vld [vmem:[#allocation6 + $0x1b8] sm:$0xff]
    %v167 = vld [vmem:[#allocation6 + $0x1c0] sm:$0xff]
    %v168 = vld [vmem:[#allocation6 + $0x1c8] sm:$0xff]
    %v169 = vld [vmem:[#allocation6 + $0x1d0] sm:$0xff]
    %v170 = vld [vmem:[#allocation6 + $0x1d8] sm:$0xff]
    %v171 = vld [vmem:[#allocation6 + $0x1e0] sm:$0xff]
    %v172 = vld [vmem:[#allocation6 + $0x1e8] sm:$0xff]
    %v173 = vld [vmem:[#allocation6 + $0x1f0] sm:$0xff]
    %v174 = vld [vmem:[#allocation6 + $0x1f8] sm:$0xff]
    %v183 = vunpack.c.l.b16 %v103
    %v184 = vunpack.c.h.b16 %v103
    %v185 = vunpack.c.l.b16 %v104
    %v186 = vunpack.c.h.b16 %v104
    %v187 = vunpack.c.l.b16 %v105
    %v188 = vunpack.c.h.b16 %v105
    %v189 = vunpack.c.l.b16 %v106
    %v190 = vunpack.c.h.b16 %v106
    %v191 = vunpack.c.l.b16 %v107
    %v192 = vunpack.c.h.b16 %v107
    %v193 = vunpack.c.l.b16 %v108
    %v194 = vunpack.c.h.b16 %v108
    %v195 = vunpack.c.l.b16 %v109
    %v196 = vunpack.c.h.b16 %v109
    %v197 = vunpack.c.l.b16 %v110
    %v198 = vunpack.c.h.b16 %v110
    %v199 = vpack.c.b16 %v185, %v183
    %v200 = vpack.c.b16 %v186, %v184
    %v201 = vpack.c.b16 %v189, %v187
    %v202 = vpack.c.b16 %v190, %v188
    %v203 = vpack.c.b16 %v193, %v191
    %v204 = vpack.c.b16 %v194, %v192
    %v205 = vpack.c.b16 %v197, %v195
    %v206 = vpack.c.b16 %v198, %v196
    %v279 = vunpack.c.l.b16 %v111
    %v280 = vunpack.c.h.b16 %v111
    %v281 = vunpack.c.l.b16 %v112
    %v282 = vunpack.c.h.b16 %v112
    %v283 = vunpack.c.l.b16 %v113
    %v284 = vunpack.c.h.b16 %v113
    %v285 = vunpack.c.l.b16 %v114
    %v286 = vunpack.c.h.b16 %v114
    %v287 = vunpack.c.l.b16 %v115
    %v288 = vunpack.c.h.b16 %v115
    %v289 = vunpack.c.l.b16 %v116
    %v290 = vunpack.c.h.b16 %v116
    %v291 = vunpack.c.l.b16 %v117
    %v292 = vunpack.c.h.b16 %v117
    %v293 = vunpack.c.l.b16 %v118
    %v294 = vunpack.c.h.b16 %v118
    %v295 = vunpack.c.l.b16 %v119
    %v296 = vunpack.c.h.b16 %v119
    %v297 = vunpack.c.l.b16 %v120
    %v298 = vunpack.c.h.b16 %v120
    %v299 = vunpack.c.l.b16 %v121
    %v300 = vunpack.c.h.b16 %v121
    %v301 = vunpack.c.l.b16 %v122
    %v302 = vunpack.c.h.b16 %v122
    %v303 = vunpack.c.l.b16 %v123
    %v304 = vunpack.c.h.b16 %v123
    %v305 = vunpack.c.l.b16 %v124
    %v306 = vunpack.c.h.b16 %v124
    %v307 = vunpack.c.l.b16 %v125
    %v308 = vunpack.c.h.b16 %v125
    %v309 = vunpack.c.l.b16 %v126
    %v310 = vunpack.c.h.b16 %v126
    %v311 = vunpack.c.l.b16 %v127
    %v312 = vunpack.c.h.b16 %v127
    %v313 = vunpack.c.l.b16 %v128
    %v314 = vunpack.c.h.b16 %v128
    %v315 = vunpack.c.l.b16 %v129
    %v316 = vunpack.c.h.b16 %v129
    %v317 = vunpack.c.l.b16 %v130
    %v318 = vunpack.c.h.b16 %v130
    %v319 = vunpack.c.l.b16 %v131
    %v320 = vunpack.c.h.b16 %v131
    %v321 = vunpack.c.l.b16 %v132
    %v322 = vunpack.c.h.b16 %v132
    %v323 = vunpack.c.l.b16 %v133
    %v324 = vunpack.c.h.b16 %v133
    %v325 = vunpack.c.l.b16 %v134
    %v326 = vunpack.c.h.b16 %v134
    %v327 = vunpack.c.l.b16 %v135
    %v328 = vunpack.c.h.b16 %v135
    %v329 = vunpack.c.l.b16 %v136
    %v330 = vunpack.c.h.b16 %v136
    %v331 = vunpack.c.l.b16 %v137
    %v332 = vunpack.c.h.b16 %v137
    %v333 = vunpack.c.l.b16 %v138
    %v334 = vunpack.c.h.b16 %v138
    %v335 = vunpack.c.l.b16 %v139
    %v336 = vunpack.c.h.b16 %v139
    %v337 = vunpack.c.l.b16 %v140
    %v338 = vunpack.c.h.b16 %v140
    %v339 = vunpack.c.l.b16 %v141
    %v340 = vunpack.c.h.b16 %v141
    %v341 = vunpack.c.l.b16 %v142
    %v342 = vunpack.c.h.b16 %v142
    %v343 = vunpack.c.l.b16 %v143
    %v344 = vunpack.c.h.b16 %v143
    %v345 = vunpack.c.l.b16 %v144
    %v346 = vunpack.c.h.b16 %v144
    %v347 = vunpack.c.l.b16 %v145
    %v348 = vunpack.c.h.b16 %v145
    %v349 = vunpack.c.l.b16 %v146
    %v350 = vunpack.c.h.b16 %v146
    %v351 = vunpack.c.l.b16 %v147
    %v352 = vunpack.c.h.b16 %v147
    %v353 = vunpack.c.l.b16 %v148
    %v354 = vunpack.c.h.b16 %v148
    %v355 = vunpack.c.l.b16 %v149
    %v356 = vunpack.c.h.b16 %v149
    %v357 = vunpack.c.l.b16 %v150
    %v358 = vunpack.c.h.b16 %v150
    %v359 = vunpack.c.l.b16 %v151
    %v360 = vunpack.c.h.b16 %v151
    %v361 = vunpack.c.l.b16 %v152
    %v362 = vunpack.c.h.b16 %v152
    %v363 = vunpack.c.l.b16 %v153
    %v364 = vunpack.c.h.b16 %v153
    %v365 = vunpack.c.l.b16 %v154
    %v366 = vunpack.c.h.b16 %v154
    %v367 = vunpack.c.l.b16 %v155
    %v368 = vunpack.c.h.b16 %v155
    %v369 = vunpack.c.l.b16 %v156
    %v370 = vunpack.c.h.b16 %v156
    %v371 = vunpack.c.l.b16 %v157
    %v372 = vunpack.c.h.b16 %v157
    %v373 = vunpack.c.l.b16 %v158
    %v374 = vunpack.c.h.b16 %v158
    %v375 = vunpack.c.l.b16 %v159
    %v376 = vunpack.c.h.b16 %v159
    %v377 = vunpack.c.l.b16 %v160
    %v378 = vunpack.c.h.b16 %v160
    %v379 = vunpack.c.l.b16 %v161
    %v380 = vunpack.c.h.b16 %v161
    %v381 = vunpack.c.l.b16 %v162
    %v382 = vunpack.c.h.b16 %v162
    %v383 = vunpack.c.l.b16 %v163
    %v384 = vunpack.c.h.b16 %v163
    %v385 = vunpack.c.l.b16 %v164
    %v386 = vunpack.c.h.b16 %v164
    %v387 = vunpack.c.l.b16 %v165
    %v388 = vunpack.c.h.b16 %v165
    %v389 = vunpack.c.l.b16 %v166
    %v390 = vunpack.c.h.b16 %v166
    %v391 = vunpack.c.l.b16 %v167
    %v392 = vunpack.c.h.b16 %v167
    %v393 = vunpack.c.l.b16 %v168
    %v394 = vunpack.c.h.b16 %v168
    %v395 = vunpack.c.l.b16 %v169
    %v396 = vunpack.c.h.b16 %v169
    %v397 = vunpack.c.l.b16 %v170
    %v398 = vunpack.c.h.b16 %v170
    %v399 = vunpack.c.l.b16 %v171
    %v400 = vunpack.c.h.b16 %v171
    %v401 = vunpack.c.l.b16 %v172
    %v402 = vunpack.c.h.b16 %v172
    %v403 = vunpack.c.l.b16 %v173
    %v404 = vunpack.c.h.b16 %v173
    %v405 = vunpack.c.l.b16 %v174
    %v406 = vunpack.c.h.b16 %v174
    %v407 = vpack.c.b16 %v283, %v279
    %v408 = vpack.c.b16 %v284, %v280
    %v409 = vpack.c.b16 %v285, %v281
    %v410 = vpack.c.b16 %v286, %v282
    %v411 = vpack.c.b16 %v291, %v287
    %v412 = vpack.c.b16 %v292, %v288
    %v413 = vpack.c.b16 %v293, %v289
    %v414 = vpack.c.b16 %v294, %v290
    %v415 = vpack.c.b16 %v299, %v295
    %v416 = vpack.c.b16 %v300, %v296
    %v417 = vpack.c.b16 %v301, %v297
    %v418 = vpack.c.b16 %v302, %v298
    %v419 = vpack.c.b16 %v307, %v303
    %v420 = vpack.c.b16 %v308, %v304
    %v421 = vpack.c.b16 %v309, %v305
    %v422 = vpack.c.b16 %v310, %v306
    %v423 = vpack.c.b16 %v315, %v311
    %v424 = vpack.c.b16 %v316, %v312
    %v425 = vpack.c.b16 %v317, %v313
    %v426 = vpack.c.b16 %v318, %v314
    %v427 = vpack.c.b16 %v323, %v319
    %v428 = vpack.c.b16 %v324, %v320
    %v429 = vpack.c.b16 %v325, %v321
    %v430 = vpack.c.b16 %v326, %v322
    %v431 = vpack.c.b16 %v331, %v327
    %v432 = vpack.c.b16 %v332, %v328
    %v433 = vpack.c.b16 %v333, %v329
    %v434 = vpack.c.b16 %v334, %v330
    %v435 = vpack.c.b16 %v339, %v335
    %v436 = vpack.c.b16 %v340, %v336
    %v437 = vpack.c.b16 %v341, %v337
    %v438 = vpack.c.b16 %v342, %v338
    %v439 = vpack.c.b16 %v347, %v343
    %v440 = vpack.c.b16 %v348, %v344
    %v441 = vpack.c.b16 %v349, %v345
    %v442 = vpack.c.b16 %v350, %v346
    %v443 = vpack.c.b16 %v355, %v351
    %v444 = vpack.c.b16 %v356, %v352
    %v445 = vpack.c.b16 %v357, %v353
    %v446 = vpack.c.b16 %v358, %v354
    %v447 = vpack.c.b16 %v363, %v359
    %v448 = vpack.c.b16 %v364, %v360
    %v449 = vpack.c.b16 %v365, %v361
    %v450 = vpack.c.b16 %v366, %v362
    %v451 = vpack.c.b16 %v371, %v367
    %v452 = vpack.c.b16 %v372, %v368
    %v453 = vpack.c.b16 %v373, %v369
    %v454 = vpack.c.b16 %v374, %v370
    %v455 = vpack.c.b16 %v379, %v375
    %v456 = vpack.c.b16 %v380, %v376
    %v457 = vpack.c.b16 %v381, %v377
    %v458 = vpack.c.b16 %v382, %v378
    %v459 = vpack.c.b16 %v387, %v383
    %v460 = vpack.c.b16 %v388, %v384
    %v461 = vpack.c.b16 %v389, %v385
    %v462 = vpack.c.b16 %v390, %v386
    %v463 = vpack.c.b16 %v395, %v391
    %v464 = vpack.c.b16 %v396, %v392
    %v465 = vpack.c.b16 %v397, %v393
    %v466 = vpack.c.b16 %v398, %v394
    %v467 = vpack.c.b16 %v403, %v399
    %v468 = vpack.c.b16 %v404, %v400
    %v469 = vpack.c.b16 %v405, %v401
    %v470 = vpack.c.b16 %v406, %v402
    %535 = vmatprep.subr.bf16.mxu0 %v436
    %536 = vmatpush1.bf16.msra.mxu0 %v435
    %537 = vmatprep.subr.bf16.mxu0 %v432
    %538 = vmatpush1.bf16.msra.mxu0 %v431
    %539 = vmatprep.subr.bf16.mxu0 %v428
    %540 = vmatpush1.bf16.msra.mxu0 %v427
    %541 = vmatprep.subr.bf16.mxu0 %v424
    %542 = vmatpush1.bf16.msra.mxu0 %v423
    %543 = vmatprep.subr.bf16.mxu0 %v420
    %544 = vmatpush1.bf16.msra.mxu0 %v419
    %545 = vmatprep.subr.bf16.mxu0 %v416
    %546 = vmatpush1.bf16.msra.mxu0 %v415
    %547 = vmatprep.subr.bf16.mxu0 %v412
    %548 = vmatpush1.bf16.msra.mxu0 %v411
    %549 = vmatprep.subr.bf16.mxu0 %v408
    %550 = vmatpush1.bf16.msra.mxu0 %v407
    %551 = vmatprep.subr.bf16.mxu0 %v468
    %552 = vmatpush2.bf16.msra.mxu0 %v467
    %553 = vmatprep.subr.bf16.mxu0 %v464
    %554 = vmatpush2.bf16.msra.mxu0 %v463
    %555 = vmatprep.subr.bf16.mxu0 %v460
    %556 = vmatpush2.bf16.msra.mxu0 %v459
    %557 = vmatprep.subr.bf16.mxu0 %v456
    %558 = vmatpush2.bf16.msra.mxu0 %v455
    %559 = vmatprep.subr.bf16.mxu0 %v452
    %560 = vmatpush2.bf16.msra.mxu0 %v451
    %561 = vmatprep.subr.bf16.mxu0 %v448
    %562 = vmatpush2.bf16.msra.mxu0 %v447
    %563 = vmatprep.subr.bf16.mxu0 %v444
    %564 = vmatpush2.bf16.msra.mxu0 %v443
    %565 = vmatprep.subr.bf16.mxu0 %v440
    %566 = vmatpush2.bf16.msra.mxu0 %v439
    %567 = vmatprep.mubr.bf16.mxu0 %v200
    %568 = vmatmul.mubr.bf16.gmra.mxu0 %v199
    %v569 = vpop.f32.mrf.mxu0
    %v570 = vadd.f32 0.0, %v569
    %v571 = vpop.f32.mrf.mxu0
    %v572 = vadd.f32 0.0, %v571
    %v573 = vpop.f32.mrf.mxu0
    %v574 = vadd.f32 0.0, %v573
    %v575 = vpop.f32.mrf.mxu0
    %v576 = vadd.f32 0.0, %v575
    %577 = vmatprep.mubr.bf16.mxu0 %v202
    %578 = vmatmul.mubr.bf16.gmra.mxu0 %v201
    %v579 = vpop.f32.mrf.mxu0
    %v580 = vadd.f32 0.0, %v579
    %v581 = vpop.f32.mrf.mxu0
    %v582 = vadd.f32 0.0, %v581
    %v583 = vpop.f32.mrf.mxu0
    %v584 = vadd.f32 0.0, %v583
    %v585 = vpop.f32.mrf.mxu0
    %v586 = vadd.f32 0.0, %v585
    %587 = vmatprep.mubr.bf16.mxu0 %v204
    %588 = vmatmul.mubr.bf16.gmra.mxu0 %v203
    %v589 = vpop.f32.mrf.mxu0
    %v590 = vadd.f32 0.0, %v589
    %v591 = vpop.f32.mrf.mxu0
    %v592 = vadd.f32 0.0, %v591
    %v593 = vpop.f32.mrf.mxu0
    %v594 = vadd.f32 0.0, %v593
    %v595 = vpop.f32.mrf.mxu0
    %v596 = vadd.f32 0.0, %v595
    %597 = vmatprep.mubr.bf16.mxu0 %v206
    %598 = vmatmul.mubr.bf16.gmra.mxu0 %v205
    %v599 = vpop.f32.mrf.mxu0
    %v600 = vadd.f32 0.0, %v599
    %v601 = vpop.f32.mrf.mxu0
    %v602 = vadd.f32 0.0, %v601
    %v603 = vpop.f32.mrf.mxu0
    %v604 = vadd.f32 0.0, %v603
    %v605 = vpop.f32.mrf.mxu0
    %v606 = vadd.f32 0.0, %v605
    %607 = vdwg.mxu0
    %608 = vmatprep.subr.bf16.mxu0 %v438
    %609 = vmatpush1.bf16.msra.mxu0 %v437
    %610 = vmatprep.subr.bf16.mxu0 %v434
    %611 = vmatpush1.bf16.msra.mxu0 %v433
    %612 = vmatprep.subr.bf16.mxu0 %v430
    %613 = vmatpush1.bf16.msra.mxu0 %v429
    %614 = vmatprep.subr.bf16.mxu0 %v426
    %615 = vmatpush1.bf16.msra.mxu0 %v425
    %616 = vmatprep.subr.bf16.mxu0 %v422
    %617 = vmatpush1.bf16.msra.mxu0 %v421
    %618 = vmatprep.subr.bf16.mxu0 %v418
    %619 = vmatpush1.bf16.msra.mxu0 %v417
    %620 = vmatprep.subr.bf16.mxu0 %v414
    %621 = vmatpush1.bf16.msra.mxu0 %v413
    %622 = vmatprep.subr.bf16.mxu0 %v410
    %623 = vmatpush1.bf16.msra.mxu0 %v409
    %624 = vmatprep.subr.bf16.mxu0 %v470
    %625 = vmatpush2.bf16.msra.mxu0 %v469
    %626 = vmatprep.subr.bf16.mxu0 %v466
    %627 = vmatpush2.bf16.msra.mxu0 %v465
    %628 = vmatprep.subr.bf16.mxu0 %v462
    %629 = vmatpush2.bf16.msra.mxu0 %v461
    %630 = vmatprep.subr.bf16.mxu0 %v458
    %631 = vmatpush2.bf16.msra.mxu0 %v457
    %632 = vmatprep.subr.bf16.mxu0 %v454
    %633 = vmatpush2.bf16.msra.mxu0 %v453
    %634 = vmatprep.subr.bf16.mxu0 %v450
    %635 = vmatpush2.bf16.msra.mxu0 %v449
    %636 = vmatprep.subr.bf16.mxu0 %v446
    %637 = vmatpush2.bf16.msra.mxu0 %v445
    %638 = vmatprep.subr.bf16.mxu0 %v442
    %639 = vmatpush2.bf16.msra.mxu0 %v441
    %640 = vmatprep.mubr.bf16.mxu0 %v200
    %641 = vmatmul.mubr.bf16.gmra.mxu0 %v199
    %v642 = vpop.f32.mrf.mxu0
    %v643 = vadd.f32 0.0, %v642
    %v644 = vpop.f32.mrf.mxu0
    %v645 = vadd.f32 0.0, %v644
    %v646 = vpop.f32.mrf.mxu0
    %v647 = vadd.f32 0.0, %v646
    %v648 = vpop.f32.mrf.mxu0
    %v649 = vadd.f32 0.0, %v648
    %650 = vmatprep.mubr.bf16.mxu0 %v202
    %651 = vmatmul.mubr.bf16.gmra.mxu0 %v201
    %v652 = vpop.f32.mrf.mxu0
    %v653 = vadd.f32 0.0, %v652
    %v654 = vpop.f32.mrf.mxu0
    %v655 = vadd.f32 0.0, %v654
    %v656 = vpop.f32.mrf.mxu0
    %v657 = vadd.f32 0.0, %v656
    %v658 = vpop.f32.mrf.mxu0
    %v659 = vadd.f32 0.0, %v658
    %660 = vmatprep.mubr.bf16.mxu0 %v204
    %661 = vmatmul.mubr.bf16.gmra.mxu0 %v203
    %v662 = vpop.f32.mrf.mxu0
    %v663 = vadd.f32 0.0, %v662
    %v664 = vpop.f32.mrf.mxu0
    %v665 = vadd.f32 0.0, %v664
    %v666 = vpop.f32.mrf.mxu0
    %v667 = vadd.f32 0.0, %v666
    %v668 = vpop.f32.mrf.mxu0
    %v669 = vadd.f32 0.0, %v668
    %670 = vmatprep.mubr.bf16.mxu0 %v206
    %671 = vmatmul.mubr.bf16.gmra.mxu0 %v205
    %v672 = vpop.f32.mrf.mxu0
    %v673 = vadd.f32 0.0, %v672
    %v674 = vpop.f32.mrf.mxu0
    %v675 = vadd.f32 0.0, %v674
    %v676 = vpop.f32.mrf.mxu0
    %v677 = vadd.f32 0.0, %v676
    %v678 = vpop.f32.mrf.mxu0
    %v679 = vadd.f32 0.0, %v678
    %680 = vdwg.mxu0
    %681 = vst [vmem:[#allocation2] sm:$0xff] %v570
    %682 = vst [vmem:[#allocation2 + $0x8] sm:$0xff] %v572
    %683 = vst [vmem:[#allocation2 + $0x10] sm:$0xff] %v643
    %684 = vst [vmem:[#allocation2 + $0x18] sm:$0xff] %v645
    %685 = vst [vmem:[#allocation2 + $0x20] sm:$0xff] %v574
    %686 = vst [vmem:[#allocation2 + $0x28] sm:$0xff] %v576
    %687 = vst [vmem:[#allocation2 + $0x30] sm:$0xff] %v647
    %688 = vst [vmem:[#allocation2 + $0x38] sm:$0xff] %v649
    %689 = vst [vmem:[#allocation2 + $0x40] sm:$0xff] %v580
    %690 = vst [vmem:[#allocation2 + $0x48] sm:$0xff] %v582
    %691 = vst [vmem:[#allocation2 + $0x50] sm:$0xff] %v653
    %692 = vst [vmem:[#allocation2 + $0x58] sm:$0xff] %v655
    %693 = vst [vmem:[#allocation2 + $0x60] sm:$0xff] %v584
    %694 = vst [vmem:[#allocation2 + $0x68] sm:$0xff] %v586
    %695 = vst [vmem:[#allocation2 + $0x70] sm:$0xff] %v657
    %696 = vst [vmem:[#allocation2 + $0x78] sm:$0xff] %v659
    %697 = vst [vmem:[#allocation2 + $0x80] sm:$0xff] %v590
    %698 = vst [vmem:[#allocation2 + $0x88] sm:$0xff] %v592
    %699 = vst [vmem:[#allocation2 + $0x90] sm:$0xff] %v663
    %700 = vst [vmem:[#allocation2 + $0x98] sm:$0xff] %v665
    %701 = vst [vmem:[#allocation2 + $0xa0] sm:$0xff] %v594
    %702 = vst [vmem:[#allocation2 + $0xa8] sm:$0xff] %v596
    %703 = vst [vmem:[#allocation2 + $0xb0] sm:$0xff] %v667
    %704 = vst [vmem:[#allocation2 + $0xb8] sm:$0xff] %v669
    %705 = vst [vmem:[#allocation2 + $0xc0] sm:$0xff] %v600
    %706 = vst [vmem:[#allocation2 + $0xc8] sm:$0xff] %v602
    %707 = vst [vmem:[#allocation2 + $0xd0] sm:$0xff] %v673
    %708 = vst [vmem:[#allocation2 + $0xd8] sm:$0xff] %v675
    %709 = vst [vmem:[#allocation2 + $0xe0] sm:$0xff] %v604
    %710 = vst [vmem:[#allocation2 + $0xe8] sm:$0xff] %v606
    %711 = vst [vmem:[#allocation2 + $0xf0] sm:$0xff] %v677
    %712 = vst [vmem:[#allocation2 + $0xf8] sm:$0xff] %v679
    %s713 = smul.u32 0, 4
    %s714 = smul.addr %s713, 8
    %s715 = scalar_lea.vmem [#allocation2], %s714
    %v716 = vld [vmem:[%s715] sm:$0xff]
    %v717 = vld [vmem:[%s715 + $0x8] sm:$0xff]
    %v718 = vld [vmem:[%s715 + $0x10] sm:$0xff]
    %v719 = vld [vmem:[%s715 + $0x18] sm:$0xff]
    %v720 = vld [vmem:[#allocation8] sm:$0xff]
    %v721 = vld [vmem:[#allocation8 + $0x8] sm:$0xff]
    %v722 = vld [vmem:[#allocation8 + $0x10] sm:$0xff]
    %v723 = vld [vmem:[#allocation8 + $0x18] sm:$0xff]
    %v724 = vld [vmem:[#allocation8 + $0x20] sm:$0xff]
    %v725 = vld [vmem:[#allocation8 + $0x28] sm:$0xff]
    %v726 = vld [vmem:[#allocation8 + $0x30] sm:$0xff]
    %v727 = vld [vmem:[#allocation8 + $0x38] sm:$0xff]
    %v728 = vld [vmem:[#allocation8 + $0x40] sm:$0xff]
    %v729 = vld [vmem:[#allocation8 + $0x48] sm:$0xff]
    %v730 = vld [vmem:[#allocation8 + $0x50] sm:$0xff]
    %v731 = vld [vmem:[#allocation8 + $0x58] sm:$0xff]
    %v732 = vld [vmem:[#allocation8 + $0x60] sm:$0xff]
    %v733 = vld [vmem:[#allocation8 + $0x68] sm:$0xff]
    %v734 = vld [vmem:[#allocation8 + $0x70] sm:$0xff]
    %v735 = vld [vmem:[#allocation8 + $0x78] sm:$0xff]
    %v736 = vld [vmem:[#allocation8 + $0x80] sm:$0xff]
    %v737 = vld [vmem:[#allocation8 + $0x88] sm:$0xff]
    %v738 = vld [vmem:[#allocation8 + $0x90] sm:$0xff]
    %v739 = vld [vmem:[#allocation8 + $0x98] sm:$0xff]
    %v740 = vld [vmem:[#allocation8 + $0xa0] sm:$0xff]
    %v741 = vld [vmem:[#allocation8 + $0xa8] sm:$0xff]
    %v742 = vld [vmem:[#allocation8 + $0xb0] sm:$0xff]
    %v743 = vld [vmem:[#allocation8 + $0xb8] sm:$0xff]
    %v744 = vld [vmem:[#allocation8 + $0xc0] sm:$0xff]
    %v745 = vld [vmem:[#allocation8 + $0xc8] sm:$0xff]
    %v746 = vld [vmem:[#allocation8 + $0xd0] sm:$0xff]
    %v747 = vld [vmem:[#allocation8 + $0xd8] sm:$0xff]
    %v748 = vld [vmem:[#allocation8 + $0xe0] sm:$0xff]
    %v749 = vld [vmem:[#allocation8 + $0xe8] sm:$0xff]
    %v750 = vld [vmem:[#allocation8 + $0xf0] sm:$0xff]
    %v751 = vld [vmem:[#allocation8 + $0xf8] sm:$0xff]
    %v784 = vunpack.c.l.b16 %v720
    %v785 = vunpack.c.h.b16 %v720
    %v786 = vunpack.c.l.b16 %v721
    %v787 = vunpack.c.h.b16 %v721
    %v788 = vunpack.c.l.b16 %v722
    %v789 = vunpack.c.h.b16 %v722
    %v790 = vunpack.c.l.b16 %v723
    %v791 = vunpack.c.h.b16 %v723
    %v792 = vunpack.c.l.b16 %v724
    %v793 = vunpack.c.h.b16 %v724
    %v794 = vunpack.c.l.b16 %v725
    %v795 = vunpack.c.h.b16 %v725
    %v796 = vunpack.c.l.b16 %v726
    %v797 = vunpack.c.h.b16 %v726
    %v798 = vunpack.c.l.b16 %v727
    %v799 = vunpack.c.h.b16 %v727
    %v800 = vunpack.c.l.b16 %v728
    %v801 = vunpack.c.h.b16 %v728
    %v802 = vunpack.c.l.b16 %v729
    %v803 = vunpack.c.h.b16 %v729
    %v804 = vunpack.c.l.b16 %v730
    %v805 = vunpack.c.h.b16 %v730
    %v806 = vunpack.c.l.b16 %v731
    %v807 = vunpack.c.h.b16 %v731
    %v808 = vunpack.c.l.b16 %v732
    %v809 = vunpack.c.h.b16 %v732
    %v810 = vunpack.c.l.b16 %v733
    %v811 = vunpack.c.h.b16 %v733
    %v812 = vunpack.c.l.b16 %v734
    %v813 = vunpack.c.h.b16 %v734
    %v814 = vunpack.c.l.b16 %v735
    %v815 = vunpack.c.h.b16 %v735
    %v816 = vunpack.c.l.b16 %v736
    %v817 = vunpack.c.h.b16 %v736
    %v818 = vunpack.c.l.b16 %v737
    %v819 = vunpack.c.h.b16 %v737
    %v820 = vunpack.c.l.b16 %v738
    %v821 = vunpack.c.h.b16 %v738
    %v822 = vunpack.c.l.b16 %v739
    %v823 = vunpack.c.h.b16 %v739
    %v824 = vunpack.c.l.b16 %v740
    %v825 = vunpack.c.h.b16 %v740
    %v826 = vunpack.c.l.b16 %v741
    %v827 = vunpack.c.h.b16 %v741
    %v828 = vunpack.c.l.b16 %v742
    %v829 = vunpack.c.h.b16 %v742
    %v830 = vunpack.c.l.b16 %v743
    %v831 = vunpack.c.h.b16 %v743
    %v832 = vunpack.c.l.b16 %v744
    %v833 = vunpack.c.h.b16 %v744
    %v834 = vunpack.c.l.b16 %v745
    %v835 = vunpack.c.h.b16 %v745
    %v836 = vunpack.c.l.b16 %v746
    %v837 = vunpack.c.h.b16 %v746
    %v838 = vunpack.c.l.b16 %v747
    %v839 = vunpack.c.h.b16 %v747
    %v840 = vunpack.c.l.b16 %v748
    %v841 = vunpack.c.h.b16 %v748
    %v842 = vunpack.c.l.b16 %v749
    %v843 = vunpack.c.h.b16 %v749
    %v844 = vunpack.c.l.b16 %v750
    %v845 = vunpack.c.h.b16 %v750
    %v846 = vunpack.c.l.b16 %v751
    %v847 = vunpack.c.h.b16 %v751
    %v848 = vpack.c.b16 %v788, %v784
    %v849 = vpack.c.b16 %v789, %v785
    %v850 = vpack.c.b16 %v790, %v786
    %v851 = vpack.c.b16 %v791, %v787
    %v852 = vpack.c.b16 %v796, %v792
    %v853 = vpack.c.b16 %v797, %v793
    %v854 = vpack.c.b16 %v798, %v794
    %v855 = vpack.c.b16 %v799, %v795
    %v856 = vpack.c.b16 %v804, %v800
    %v857 = vpack.c.b16 %v805, %v801
    %v858 = vpack.c.b16 %v806, %v802
    %v859 = vpack.c.b16 %v807, %v803
    %v860 = vpack.c.b16 %v812, %v808
    %v861 = vpack.c.b16 %v813, %v809
    %v862 = vpack.c.b16 %v814, %v810
    %v863 = vpack.c.b16 %v815, %v811
    %v864 = vpack.c.b16 %v820, %v816
    %v865 = vpack.c.b16 %v821, %v817
    %v866 = vpack.c.b16 %v822, %v818
    %v867 = vpack.c.b16 %v823, %v819
    %v868 = vpack.c.b16 %v828, %v824
    %v869 = vpack.c.b16 %v829, %v825
    %v870 = vpack.c.b16 %v830, %v826
    %v871 = vpack.c.b16 %v831, %v827
    %v872 = vpack.c.b16 %v836, %v832
    %v873 = vpack.c.b16 %v837, %v833
    %v874 = vpack.c.b16 %v838, %v834
    %v875 = vpack.c.b16 %v839, %v835
    %v876 = vpack.c.b16 %v844, %v840
    %v877 = vpack.c.b16 %v845, %v841
    %v878 = vpack.c.b16 %v846, %v842
    %v879 = vpack.c.b16 %v847, %v843
    %912 = vmatprep.subr.bf16.mxu0 %v877
    %913 = vmatpush1.bf16.msra.mxu0 %v876
    %914 = vmatprep.subr.bf16.mxu0 %v873
    %915 = vmatpush1.bf16.msra.mxu0 %v872
    %916 = vmatprep.subr.bf16.mxu0 %v869
    %917 = vmatpush1.bf16.msra.mxu0 %v868
    %918 = vmatprep.subr.bf16.mxu0 %v865
    %919 = vmatpush1.bf16.msra.mxu0 %v864
    %920 = vmatprep.subr.bf16.mxu0 %v861
    %921 = vmatpush1.bf16.msra.mxu0 %v860
    %922 = vmatprep.subr.bf16.mxu0 %v857
    %923 = vmatpush1.bf16.msra.mxu0 %v856
    %924 = vmatprep.subr.bf16.mxu0 %v853
    %925 = vmatpush1.bf16.msra.mxu0 %v852
    %926 = vmatprep.subr.bf16.mxu0 %v849
    %927 = vmatpush1.bf16.msra.mxu0 %v848
    %928 = vmatprep.subr.bf16.mxu0 0
    %929 = vmatpush2.bf16.msra.mxu0 0
    %930 = vmatprep.subr.bf16.mxu0 0
    %931 = vmatpush2.bf16.msra.mxu0 0
    %932 = vmatprep.subr.bf16.mxu0 0
    %933 = vmatpush2.bf16.msra.mxu0 0
    %934 = vmatprep.subr.bf16.mxu0 0
    %935 = vmatpush2.bf16.msra.mxu0 0
    %936 = vmatprep.subr.bf16.mxu0 0
    %937 = vmatpush2.bf16.msra.mxu0 0
    %938 = vmatprep.subr.bf16.mxu0 0
    %939 = vmatpush2.bf16.msra.mxu0 0
    %940 = vmatprep.subr.bf16.mxu0 0
    %941 = vmatpush2.bf16.msra.mxu0 0
    %942 = vmatprep.subr.bf16.mxu0 0
    %943 = vmatpush2.bf16.msra.mxu0 0
    %944 = vmatprep.mubr.bf16.mxu0 0
    %945 = vmatmul.mubr.bf16.gmra.mxu0 0
    %v946 = vpop.f32.mrf.mxu0
    %v947 = vadd.f32 0.0, %v946
    %v948 = vpop.f32.mrf.mxu0
    %v949 = vadd.f32 0.0, %v948
    %v950 = vpop.f32.mrf.mxu0
    %v951 = vpop.f32.mrf.mxu0
    %952 = vdwg.mxu0
    %953 = vmatprep.subr.bf16.mxu0 %v879
    %954 = vmatpush1.bf16.msra.mxu0 %v878
    %955 = vmatprep.subr.bf16.mxu0 %v875
    %956 = vmatpush1.bf16.msra.mxu0 %v874
    %957 = vmatprep.subr.bf16.mxu0 %v871
    %958 = vmatpush1.bf16.msra.mxu0 %v870
    %959 = vmatprep.subr.bf16.mxu0 %v867
    %960 = vmatpush1.bf16.msra.mxu0 %v866
    %961 = vmatprep.subr.bf16.mxu0 %v863
    %962 = vmatpush1.bf16.msra.mxu0 %v862
    %963 = vmatprep.subr.bf16.mxu0 %v859
    %964 = vmatpush1.bf16.msra.mxu0 %v858
    %965 = vmatprep.subr.bf16.mxu0 %v855
    %966 = vmatpush1.bf16.msra.mxu0 %v854
    %967 = vmatprep.subr.bf16.mxu0 %v851
    %968 = vmatpush1.bf16.msra.mxu0 %v850
    %969 = vmatprep.subr.bf16.mxu0 0
    %970 = vmatpush2.bf16.msra.mxu0 0
    %971 = vmatprep.subr.bf16.mxu0 0
    %972 = vmatpush2.bf16.msra.mxu0 0
    %973 = vmatprep.subr.bf16.mxu0 0
    %974 = vmatpush2.bf16.msra.mxu0 0
    %975 = vmatprep.subr.bf16.mxu0 0
    %976 = vmatpush2.bf16.msra.mxu0 0
    %977 = vmatprep.subr.bf16.mxu0 0
    %978 = vmatpush2.bf16.msra.mxu0 0
    %979 = vmatprep.subr.bf16.mxu0 0
    %980 = vmatpush2.bf16.msra.mxu0 0
    %981 = vmatprep.subr.bf16.mxu0 0
    %982 = vmatpush2.bf16.msra.mxu0 0
    %983 = vmatprep.subr.bf16.mxu0 0
    %984 = vmatpush2.bf16.msra.mxu0 0
    %985 = vmatprep.mubr.bf16.mxu0 0
    %986 = vmatmul.mubr.bf16.gmra.mxu0 0
    %v987 = vpop.f32.mrf.mxu0
    %v988 = vadd.f32 0.0, %v987
    %v989 = vpop.f32.mrf.mxu0
    %v990 = vadd.f32 0.0, %v989
    %v991 = vpop.f32.mrf.mxu0
    %v992 = vpop.f32.mrf.mxu0
    %993 = vdwg.mxu0
    %v994 = vadd.f32 %v716, %v947
    %v995 = vadd.f32 %v717, %v949
    %v996 = vadd.f32 %v718, %v988
    %v997 = vadd.f32 %v719, %v990
    %v998 = vxor.u32 %v994, 2147483648
    %v999 = vxor.u32 %v995, 2147483648
    %v1000 = vxor.u32 %v996, 2147483648
    %v1001 = vmul.f32 %v998, 1.442695
    %v1002 = vpow.pop %v1001
    %v1003 = vmul.f32 %v999, 1.442695
    %v1004 = vpow.pop %v1003
    %v1005 = vmul.f32 %v1000, 1.442695
    %v1006 = vpow.pop %v1005
    %v1007 = vadd.f32 %v1002, 1.0
    %v1008 = vadd.f32 %v1004, 1.0
    %v1009 = vadd.f32 %v1006, 1.0
    %v1010 = vrcp.pop %v1007
    %v1011 = vmul.f32 1.0, %v1010
    %v1012 = vrcp.pop %v1008
    %v1013 = vmul.f32 1.0, %v1012
    %v1014 = vrcp.pop %v1009
    %v1015 = vmul.f32 1.0, %v1014
    %v1016 = vtanh.pop %v997
    %v1017 = vmul.f32 %v1013, 0.0
    %v1018 = vmul.f32 %v1011, %v1016
    %v1019 = vadd.f32 %v1017, %v1018
    %v1020 = vtanh.pop %v1019
    %v1021 = vmul.f32 %v1015, %v1020
    %s1022 = smul.u32 1, 4
    %s1023 = smul.addr %s1022, 8
    %s1024 = scalar_lea.vmem [#allocation2], %s1023
    %v1025 = vld [vmem:[%s1024] sm:$0xff]
    %v1026 = vld [vmem:[%s1024 + $0x8] sm:$0xff]
    %v1027 = vld [vmem:[%s1024 + $0x10] sm:$0xff]
    %v1028 = vld [vmem:[%s1024 + $0x18] sm:$0xff]
    %v1029 = vpack.c.bf16 %v1021, %v1021
    %1030 = vmatprep.subr.bf16.mxu0 %v877
    %1031 = vmatpush1.bf16.msra.mxu0 %v876
    %1032 = vmatprep.subr.bf16.mxu0 %v873
    %1033 = vmatpush1.bf16.msra.mxu0 %v872
    %1034 = vmatprep.subr.bf16.mxu0 %v869
    %1035 = vmatpush1.bf16.msra.mxu0 %v868
    %1036 = vmatprep.subr.bf16.mxu0 %v865
    %1037 = vmatpush1.bf16.msra.mxu0 %v864
    %1038 = vmatprep.subr.bf16.mxu0 %v861
    %1039 = vmatpush1.bf16.msra.mxu0 %v860
    %1040 = vmatprep.subr.bf16.mxu0 %v857
    %1041 = vmatpush1.bf16.msra.mxu0 %v856
    %1042 = vmatprep.subr.bf16.mxu0 %v853
    %1043 = vmatpush1.bf16.msra.mxu0 %v852
    %1044 = vmatprep.subr.bf16.mxu0 %v849
    %1045 = vmatpush1.bf16.msra.mxu0 %v848
    %1046 = vmatprep.subr.bf16.mxu0 0
    %1047 = vmatpush2.bf16.msra.mxu0 0
    %1048 = vmatprep.subr.bf16.mxu0 0
    %1049 = vmatpush2.bf16.msra.mxu0 0
    %1050 = vmatprep.subr.bf16.mxu0 0
    %1051 = vmatpush2.bf16.msra.mxu0 0
    %1052 = vmatprep.subr.bf16.mxu0 0
    %1053 = vmatpush2.bf16.msra.mxu0 0
    %1054 = vmatprep.subr.bf16.mxu0 0
    %1055 = vmatpush2.bf16.msra.mxu0 0
    %1056 = vmatprep.subr.bf16.mxu0 0
    %1057 = vmatpush2.bf16.msra.mxu0 0
    %1058 = vmatprep.subr.bf16.mxu0 0
    %1059 = vmatpush2.bf16.msra.mxu0 0
    %1060 = vmatprep.subr.bf16.mxu0 0
    %1061 = vmatpush2.bf16.msra.mxu0 0
    %1062 = vmatprep.mubr.bf16.mxu0 0
    %1063 = vmatmul.mubr.bf16.gmra.mxu0 %v1029
    %v1064 = vpop.f32.mrf.mxu0
    %v1065 = vadd.f32 0.0, %v1064
    %v1066 = vpop.f32.mrf.mxu0
    %v1067 = vadd.f32 0.0, %v1066
    %v1068 = vpop.f32.mrf.mxu0
    %v1069 = vpop.f32.mrf.mxu0
    %1070 = vdwg.mxu0
    %1071 = vmatprep.subr.bf16.mxu0 %v879
    %1072 = vmatpush1.bf16.msra.mxu0 %v878
    %1073 = vmatprep.subr.bf16.mxu0 %v875
    %1074 = vmatpush1.bf16.msra.mxu0 %v874
    %1075 = vmatprep.subr.bf16.mxu0 %v871
    %1076 = vmatpush1.bf16.msra.mxu0 %v870
    %1077 = vmatprep.subr.bf16.mxu0 %v867
    %1078 = vmatpush1.bf16.msra.mxu0 %v866
    %1079 = vmatprep.subr.bf16.mxu0 %v863
    %1080 = vmatpush1.bf16.msra.mxu0 %v862
    %1081 = vmatprep.subr.bf16.mxu0 %v859
    %1082 = vmatpush1.bf16.msra.mxu0 %v858
    %1083 = vmatprep.subr.bf16.mxu0 %v855
    %1084 = vmatpush1.bf16.msra.mxu0 %v854
    %1085 = vmatprep.subr.bf16.mxu0 %v851
    %1086 = vmatpush1.bf16.msra.mxu0 %v850
    %1087 = vmatprep.subr.bf16.mxu0 0
    %1088 = vmatpush2.bf16.msra.mxu0 0
    %1089 = vmatprep.subr.bf16.mxu0 0
    %1090 = vmatpush2.bf16.msra.mxu0 0
    %1091 = vmatprep.subr.bf16.mxu0 0
    %1092 = vmatpush2.bf16.msra.mxu0 0
    %1093 = vmatprep.subr.bf16.mxu0 0
    %1094 = vmatpush2.bf16.msra.mxu0 0
    %1095 = vmatprep.subr.bf16.mxu0 0
    %1096 = vmatpush2.bf16.msra.mxu0 0
    %1097 = vmatprep.subr.bf16.mxu0 0
    %1098 = vmatpush2.bf16.msra.mxu0 0
    %1099 = vmatprep.subr.bf16.mxu0 0
    %1100 = vmatpush2.bf16.msra.mxu0 0
    %1101 = vmatprep.subr.bf16.mxu0 0
    %1102 = vmatpush2.bf16.msra.mxu0 0
    %1103 = vmatprep.mubr.bf16.mxu0 0
    %1104 = vmatmul.mubr.bf16.gmra.mxu0 %v1029
    %v1105 = vpop.f32.mrf.mxu0
    %v1106 = vadd.f32 0.0, %v1105
    %v1107 = vpop.f32.mrf.mxu0
    %v1108 = vadd.f32 0.0, %v1107
    %v1109 = vpop.f32.mrf.mxu0
    %v1110 = vpop.f32.mrf.mxu0
    %1111 = vdwg.mxu0
    %v1112 = vadd.f32 %v1025, %v1065
    %v1113 = vadd.f32 %v1026, %v1067
    %v1114 = vadd.f32 %v1027, %v1106
    %v1115 = vadd.f32 %v1028, %v1108
    %v1116 = vxor.u32 %v1112, 2147483648
    %v1117 = vxor.u32 %v1113, 2147483648
    %v1118 = vxor.u32 %v1114, 2147483648
    %v1119 = vmul.f32 %v1116, 1.442695
    %v1120 = vpow.pop %v1119
    %v1121 = vmul.f32 %v1117, 1.442695
    %v1122 = vpow.pop %v1121
    %v1123 = vmul.f32 %v1118, 1.442695
    %v1124 = vpow.pop %v1123
    %v1125 = vadd.f32 %v1120, 1.0
    %v1126 = vadd.f32 %v1122, 1.0
    %v1127 = vadd.f32 %v1124, 1.0
    %v1128 = vrcp.pop %v1125
    %v1129 = vmul.f32 1.0, %v1128
    %v1130 = vrcp.pop %v1126
    %v1131 = vmul.f32 1.0, %v1130
    %v1132 = vrcp.pop %v1127
    %v1133 = vmul.f32 1.0, %v1132
    %v1134 = vtanh.pop %v1115
    %v1135 = vmul.f32 %v1131, %v1019
    %v1136 = vmul.f32 %v1129, %v1134
    %v1137 = vadd.f32 %v1135, %v1136
    %v1138 = vtanh.pop %v1137
    %v1139 = vmul.f32 %v1133, %v1138
    %s1140 = smul.u32 2, 4
    %s1141 = smul.addr %s1140, 8
    %s1142 = scalar_lea.vmem [#allocation2], %s1141
    %v1143 = vld [vmem:[%s1142] sm:$0xff]
    %v1144 = vld [vmem:[%s1142 + $0x8] sm:$0xff]
    %v1145 = vld [vmem:[%s1142 + $0x10] sm:$0xff]
    %v1146 = vld [vmem:[%s1142 + $0x18] sm:$0xff]
    %v1147 = vpack.c.bf16 %v1139, %v1139
    %1148 = vmatprep.subr.bf16.mxu0 %v877
    %1149 = vmatpush1.bf16.msra.mxu0 %v876
    %1150 = vmatprep.subr.bf16.mxu0 %v873
    %1151 = vmatpush1.bf16.msra.mxu0 %v872
    %1152 = vmatprep.subr.bf16.mxu0 %v869
    %1153 = vmatpush1.bf16.msra.mxu0 %v868
    %1154 = vmatprep.subr.bf16.mxu0 %v865
    %1155 = vmatpush1.bf16.msra.mxu0 %v864
    %1156 = vmatprep.subr.bf16.mxu0 %v861
    %1157 = vmatpush1.bf16.msra.mxu0 %v860
    %1158 = vmatprep.subr.bf16.mxu0 %v857
    %1159 = vmatpush1.bf16.msra.mxu0 %v856
    %1160 = vmatprep.subr.bf16.mxu0 %v853
    %1161 = vmatpush1.bf16.msra.mxu0 %v852
    %1162 = vmatprep.subr.bf16.mxu0 %v849
    %1163 = vmatpush1.bf16.msra.mxu0 %v848
    %1164 = vmatprep.subr.bf16.mxu0 0
    %1165 = vmatpush2.bf16.msra.mxu0 0
    %1166 = vmatprep.subr.bf16.mxu0 0
    %1167 = vmatpush2.bf16.msra.mxu0 0
    %1168 = vmatprep.subr.bf16.mxu0 0
    %1169 = vmatpush2.bf16.msra.mxu0 0
    %1170 = vmatprep.subr.bf16.mxu0 0
    %1171 = vmatpush2.bf16.msra.mxu0 0
    %1172 = vmatprep.subr.bf16.mxu0 0
    %1173 = vmatpush2.bf16.msra.mxu0 0
    %1174 = vmatprep.subr.bf16.mxu0 0
    %1175 = vmatpush2.bf16.msra.mxu0 0
    %1176 = vmatprep.subr.bf16.mxu0 0
    %1177 = vmatpush2.bf16.msra.mxu0 0
    %1178 = vmatprep.subr.bf16.mxu0 0
    %1179 = vmatpush2.bf16.msra.mxu0 0
    %1180 = vmatprep.mubr.bf16.mxu0 0
    %1181 = vmatmul.mubr.bf16.gmra.mxu0 %v1147
    %v1182 = vpop.f32.mrf.mxu0
    %v1183 = vadd.f32 0.0, %v1182
    %v1184 = vpop.f32.mrf.mxu0
    %v1185 = vadd.f32 0.0, %v1184
    %v1186 = vpop.f32.mrf.mxu0
    %v1187 = vpop.f32.mrf.mxu0
    %1188 = vdwg.mxu0
    %1189 = vmatprep.subr.bf16.mxu0 %v879
    %1190 = vmatpush1.bf16.msra.mxu0 %v878
    %1191 = vmatprep.subr.bf16.mxu0 %v875
    %1192 = vmatpush1.bf16.msra.mxu0 %v874
    %1193 = vmatprep.subr.bf16.mxu0 %v871
    %1194 = vmatpush1.bf16.msra.mxu0 %v870
    %1195 = vmatprep.subr.bf16.mxu0 %v867
    %1196 = vmatpush1.bf16.msra.mxu0 %v866
    %1197 = vmatprep.subr.bf16.mxu0 %v863
    %1198 = vmatpush1.bf16.msra.mxu0 %v862
    %1199 = vmatprep.subr.bf16.mxu0 %v859
    %1200 = vmatpush1.bf16.msra.mxu0 %v858
    %1201 = vmatprep.subr.bf16.mxu0 %v855
    %1202 = vmatpush1.bf16.msra.mxu0 %v854
    %1203 = vmatprep.subr.bf16.mxu0 %v851
    %1204 = vmatpush1.bf16.msra.mxu0 %v850
    %1205 = vmatprep.subr.bf16.mxu0 0
    %1206 = vmatpush2.bf16.msra.mxu0 0
    %1207 = vmatprep.subr.bf16.mxu0 0
    %1208 = vmatpush2.bf16.msra.mxu0 0
    %1209 = vmatprep.subr.bf16.mxu0 0
    %1210 = vmatpush2.bf16.msra.mxu0 0
    %1211 = vmatprep.subr.bf16.mxu0 0
    %1212 = vmatpush2.bf16.msra.mxu0 0
    %1213 = vmatprep.subr.bf16.mxu0 0
    %1214 = vmatpush2.bf16.msra.mxu0 0
    %1215 = vmatprep.subr.bf16.mxu0 0
    %1216 = vmatpush2.bf16.msra.mxu0 0
    %1217 = vmatprep.subr.bf16.mxu0 0
    %1218 = vmatpush2.bf16.msra.mxu0 0
    %1219 = vmatprep.subr.bf16.mxu0 0
    %1220 = vmatpush2.bf16.msra.mxu0 0
    %1221 = vmatprep.mubr.bf16.mxu0 0
    %1222 = vmatmul.mubr.bf16.gmra.mxu0 %v1147
    %v1223 = vpop.f32.mrf.mxu0
    %v1224 = vadd.f32 0.0, %v1223
    %v1225 = vpop.f32.mrf.mxu0
    %v1226 = vadd.f32 0.0, %v1225
    %v1227 = vpop.f32.mrf.mxu0
    %v1228 = vpop.f32.mrf.mxu0
    %1229 = vdwg.mxu0
    %v1230 = vadd.f32 %v1143, %v1183
    %v1231 = vadd.f32 %v1144, %v1185
    %v1232 = vadd.f32 %v1145, %v1224
    %v1233 = vadd.f32 %v1146, %v1226
    %v1234 = vxor.u32 %v1230, 2147483648
    %v1235 = vxor.u32 %v1231, 2147483648
    %v1236 = vxor.u32 %v1232, 2147483648
    %v1237 = vmul.f32 %v1234, 1.442695
    %v1238 = vpow.pop %v1237
    %v1239 = vmul.f32 %v1235, 1.442695
    %v1240 = vpow.pop %v1239
    %v1241 = vmul.f32 %v1236, 1.442695
    %v1242 = vpow.pop %v1241
    %v1243 = vadd.f32 %v1238, 1.0
    %v1244 = vadd.f32 %v1240, 1.0
    %v1245 = vadd.f32 %v1242, 1.0
    %v1246 = vrcp.pop %v1243
    %v1247 = vmul.f32 1.0, %v1246
    %v1248 = vrcp.pop %v1244
    %v1249 = vmul.f32 1.0, %v1248
    %v1250 = vrcp.pop %v1245
    %v1251 = vmul.f32 1.0, %v1250
    %v1252 = vtanh.pop %v1233
    %v1253 = vmul.f32 %v1249, %v1137
    %v1254 = vmul.f32 %v1247, %v1252
    %v1255 = vadd.f32 %v1253, %v1254
    %v1256 = vtanh.pop %v1255
    %v1257 = vmul.f32 %v1251, %v1256
    %s1258 = smul.u32 3, 4
    %s1259 = smul.addr %s1258, 8
    %s1260 = scalar_lea.vmem [#allocation2], %s1259
    %v1261 = vld [vmem:[%s1260] sm:$0xff]
    %v1262 = vld [vmem:[%s1260 + $0x8] sm:$0xff]
    %v1263 = vld [vmem:[%s1260 + $0x10] sm:$0xff]
    %v1264 = vld [vmem:[%s1260 + $0x18] sm:$0xff]
    %v1265 = vpack.c.bf16 %v1257, %v1257
    %1266 = vmatprep.subr.bf16.mxu0 %v877
    %1267 = vmatpush1.bf16.msra.mxu0 %v876
    %1268 = vmatprep.subr.bf16.mxu0 %v873
    %1269 = vmatpush1.bf16.msra.mxu0 %v872
    %1270 = vmatprep.subr.bf16.mxu0 %v869
    %1271 = vmatpush1.bf16.msra.mxu0 %v868
    %1272 = vmatprep.subr.bf16.mxu0 %v865
    %1273 = vmatpush1.bf16.msra.mxu0 %v864
    %1274 = vmatprep.subr.bf16.mxu0 %v861
    %1275 = vmatpush1.bf16.msra.mxu0 %v860
    %1276 = vmatprep.subr.bf16.mxu0 %v857
    %1277 = vmatpush1.bf16.msra.mxu0 %v856
    %1278 = vmatprep.subr.bf16.mxu0 %v853
    %1279 = vmatpush1.bf16.msra.mxu0 %v852
    %1280 = vmatprep.subr.bf16.mxu0 %v849
    %1281 = vmatpush1.bf16.msra.mxu0 %v848
    %1282 = vmatprep.subr.bf16.mxu0 0
    %1283 = vmatpush2.bf16.msra.mxu0 0
    %1284 = vmatprep.subr.bf16.mxu0 0
    %1285 = vmatpush2.bf16.msra.mxu0 0
    %1286 = vmatprep.subr.bf16.mxu0 0
    %1287 = vmatpush2.bf16.msra.mxu0 0
    %1288 = vmatprep.subr.bf16.mxu0 0
    %1289 = vmatpush2.bf16.msra.mxu0 0
    %1290 = vmatprep.subr.bf16.mxu0 0
    %1291 = vmatpush2.bf16.msra.mxu0 0
    %1292 = vmatprep.subr.bf16.mxu0 0
    %1293 = vmatpush2.bf16.msra.mxu0 0
    %1294 = vmatprep.subr.bf16.mxu0 0
    %1295 = vmatpush2.bf16.msra.mxu0 0
    %1296 = vmatprep.subr.bf16.mxu0 0
    %1297 = vmatpush2.bf16.msra.mxu0 0
    %1298 = vmatprep.mubr.bf16.mxu0 0
    %1299 = vmatmul.mubr.bf16.gmra.mxu0 %v1265
    %v1300 = vpop.f32.mrf.mxu0
    %v1301 = vadd.f32 0.0, %v1300
    %v1302 = vpop.f32.mrf.mxu0
    %v1303 = vadd.f32 0.0, %v1302
    %v1304 = vpop.f32.mrf.mxu0
    %v1305 = vpop.f32.mrf.mxu0
    %1306 = vdwg.mxu0
    %1307 = vmatprep.subr.bf16.mxu0 %v879
    %1308 = vmatpush1.bf16.msra.mxu0 %v878
    %1309 = vmatprep.subr.bf16.mxu0 %v875
    %1310 = vmatpush1.bf16.msra.mxu0 %v874
    %1311 = vmatprep.subr.bf16.mxu0 %v871
    %1312 = vmatpush1.bf16.msra.mxu0 %v870
    %1313 = vmatprep.subr.bf16.mxu0 %v867
    %1314 = vmatpush1.bf16.msra.mxu0 %v866
    %1315 = vmatprep.subr.bf16.mxu0 %v863
    %1316 = vmatpush1.bf16.msra.mxu0 %v862
    %1317 = vmatprep.subr.bf16.mxu0 %v859
    %1318 = vmatpush1.bf16.msra.mxu0 %v858
    %1319 = vmatprep.subr.bf16.mxu0 %v855
    %1320 = vmatpush1.bf16.msra.mxu0 %v854
    %1321 = vmatprep.subr.bf16.mxu0 %v851
    %1322 = vmatpush1.bf16.msra.mxu0 %v850
    %1323 = vmatprep.subr.bf16.mxu0 0
    %1324 = vmatpush2.bf16.msra.mxu0 0
    %1325 = vmatprep.subr.bf16.mxu0 0
    %1326 = vmatpush2.bf16.msra.mxu0 0
    %1327 = vmatprep.subr.bf16.mxu0 0
    %1328 = vmatpush2.bf16.msra.mxu0 0
    %1329 = vmatprep.subr.bf16.mxu0 0
    %1330 = vmatpush2.bf16.msra.mxu0 0
    %1331 = vmatprep.subr.bf16.mxu0 0
    %1332 = vmatpush2.bf16.msra.mxu0 0
    %1333 = vmatprep.subr.bf16.mxu0 0
    %1334 = vmatpush2.bf16.msra.mxu0 0
    %1335 = vmatprep.subr.bf16.mxu0 0
    %1336 = vmatpush2.bf16.msra.mxu0 0
    %1337 = vmatprep.subr.bf16.mxu0 0
    %1338 = vmatpush2.bf16.msra.mxu0 0
    %1339 = vmatprep.mubr.bf16.mxu0 0
    %1340 = vmatmul.mubr.bf16.gmra.mxu0 %v1265
    %v1341 = vpop.f32.mrf.mxu0
    %v1342 = vadd.f32 0.0, %v1341
    %v1343 = vpop.f32.mrf.mxu0
    %v1344 = vadd.f32 0.0, %v1343
    %v1345 = vpop.f32.mrf.mxu0
    %v1346 = vpop.f32.mrf.mxu0
    %1347 = vdwg.mxu0
    %v1348 = vadd.f32 %v1261, %v1301
    %v1349 = vadd.f32 %v1262, %v1303
    %v1350 = vadd.f32 %v1263, %v1342
    %v1351 = vadd.f32 %v1264, %v1344
    %v1352 = vxor.u32 %v1348, 2147483648
    %v1353 = vxor.u32 %v1349, 2147483648
    %v1354 = vxor.u32 %v1350, 2147483648
    %v1355 = vmul.f32 %v1352, 1.442695
    %v1356 = vpow.pop %v1355
    %v1357 = vmul.f32 %v1353, 1.442695
    %v1358 = vpow.pop %v1357
    %v1359 = vmul.f32 %v1354, 1.442695
    %v1360 = vpow.pop %v1359
    %v1361 = vadd.f32 %v1356, 1.0
    %v1362 = vadd.f32 %v1358, 1.0
    %v1363 = vadd.f32 %v1360, 1.0
    %v1364 = vrcp.pop %v1361
    %v1365 = vmul.f32 1.0, %v1364
    %v1366 = vrcp.pop %v1362
    %v1367 = vmul.f32 1.0, %v1366
    %v1368 = vrcp.pop %v1363
    %v1369 = vmul.f32 1.0, %v1368
    %v1370 = vtanh.pop %v1351
    %v1371 = vmul.f32 %v1367, %v1255
    %v1372 = vmul.f32 %v1365, %v1370
    %v1373 = vadd.f32 %v1371, %v1372
    %v1374 = vtanh.pop %v1373
    %v1375 = vmul.f32 %v1369, %v1374
    %s1376 = smul.u32 4, 4
    %s1377 = smul.addr %s1376, 8
    %s1378 = scalar_lea.vmem [#allocation2], %s1377
    %v1379 = vld [vmem:[%s1378] sm:$0xff]
    %v1380 = vld [vmem:[%s1378 + $0x8] sm:$0xff]
    %v1381 = vld [vmem:[%s1378 + $0x10] sm:$0xff]
    %v1382 = vld [vmem:[%s1378 + $0x18] sm:$0xff]
    %v1383 = vpack.c.bf16 %v1375, %v1375
    %1384 = vmatprep.subr.bf16.mxu0 %v877
    %1385 = vmatpush1.bf16.msra.mxu0 %v876
    %1386 = vmatprep.subr.bf16.mxu0 %v873
    %1387 = vmatpush1.bf16.msra.mxu0 %v872
    %1388 = vmatprep.subr.bf16.mxu0 %v869
    %1389 = vmatpush1.bf16.msra.mxu0 %v868
    %1390 = vmatprep.subr.bf16.mxu0 %v865
    %1391 = vmatpush1.bf16.msra.mxu0 %v864
    %1392 = vmatprep.subr.bf16.mxu0 %v861
    %1393 = vmatpush1.bf16.msra.mxu0 %v860
    %1394 = vmatprep.subr.bf16.mxu0 %v857
    %1395 = vmatpush1.bf16.msra.mxu0 %v856
    %1396 = vmatprep.subr.bf16.mxu0 %v853
    %1397 = vmatpush1.bf16.msra.mxu0 %v852
    %1398 = vmatprep.subr.bf16.mxu0 %v849
    %1399 = vmatpush1.bf16.msra.mxu0 %v848
    %1400 = vmatprep.subr.bf16.mxu0 0
    %1401 = vmatpush2.bf16.msra.mxu0 0
    %1402 = vmatprep.subr.bf16.mxu0 0
    %1403 = vmatpush2.bf16.msra.mxu0 0
    %1404 = vmatprep.subr.bf16.mxu0 0
    %1405 = vmatpush2.bf16.msra.mxu0 0
    %1406 = vmatprep.subr.bf16.mxu0 0
    %1407 = vmatpush2.bf16.msra.mxu0 0
    %1408 = vmatprep.subr.bf16.mxu0 0
    %1409 = vmatpush2.bf16.msra.mxu0 0
    %1410 = vmatprep.subr.bf16.mxu0 0
    %1411 = vmatpush2.bf16.msra.mxu0 0
    %1412 = vmatprep.subr.bf16.mxu0 0
    %1413 = vmatpush2.bf16.msra.mxu0 0
    %1414 = vmatprep.subr.bf16.mxu0 0
    %1415 = vmatpush2.bf16.msra.mxu0 0
    %1416 = vmatprep.mubr.bf16.mxu0 0
    %1417 = vmatmul.mubr.bf16.gmra.mxu0 %v1383
    %v1418 = vpop.f32.mrf.mxu0
    %v1419 = vadd.f32 0.0, %v1418
    %v1420 = vpop.f32.mrf.mxu0
    %v1421 = vadd.f32 0.0, %v1420
    %v1422 = vpop.f32.mrf.mxu0
    %v1423 = vpop.f32.mrf.mxu0
    %1424 = vdwg.mxu0
    %1425 = vmatprep.subr.bf16.mxu0 %v879
    %1426 = vmatpush1.bf16.msra.mxu0 %v878
    %1427 = vmatprep.subr.bf16.mxu0 %v875
    %1428 = vmatpush1.bf16.msra.mxu0 %v874
    %1429 = vmatprep.subr.bf16.mxu0 %v871
    %1430 = vmatpush1.bf16.msra.mxu0 %v870
    %1431 = vmatprep.subr.bf16.mxu0 %v867
    %1432 = vmatpush1.bf16.msra.mxu0 %v866
    %1433 = vmatprep.subr.bf16.mxu0 %v863
    %1434 = vmatpush1.bf16.msra.mxu0 %v862
    %1435 = vmatprep.subr.bf16.mxu0 %v859
    %1436 = vmatpush1.bf16.msra.mxu0 %v858
    %1437 = vmatprep.subr.bf16.mxu0 %v855
    %1438 = vmatpush1.bf16.msra.mxu0 %v854
    %1439 = vmatprep.subr.bf16.mxu0 %v851
    %1440 = vmatpush1.bf16.msra.mxu0 %v850
    %1441 = vmatprep.subr.bf16.mxu0 0
    %1442 = vmatpush2.bf16.msra.mxu0 0
    %1443 = vmatprep.subr.bf16.mxu0 0
    %1444 = vmatpush2.bf16.msra.mxu0 0
    %1445 = vmatprep.subr.bf16.mxu0 0
    %1446 = vmatpush2.bf16.msra.mxu0 0
    %1447 = vmatprep.subr.bf16.mxu0 0
    %1448 = vmatpush2.bf16.msra.mxu0 0
    %1449 = vmatprep.subr.bf16.mxu0 0
    %1450 = vmatpush2.bf16.msra.mxu0 0
    %1451 = vmatprep.subr.bf16.mxu0 0
    %1452 = vmatpush2.bf16.msra.mxu0 0
    %1453 = vmatprep.subr.bf16.mxu0 0
    %1454 = vmatpush2.bf16.msra.mxu0 0
    %1455 = vmatprep.subr.bf16.mxu0 0
    %1456 = vmatpush2.bf16.msra.mxu0 0
    %1457 = vmatprep.mubr.bf16.mxu0 0
    %1458 = vmatmul.mubr.bf16.gmra.mxu0 %v1383
    %v1459 = vpop.f32.mrf.mxu0
    %v1460 = vadd.f32 0.0, %v1459
    %v1461 = vpop.f32.mrf.mxu0
    %v1462 = vadd.f32 0.0, %v1461
    %v1463 = vpop.f32.mrf.mxu0
    %v1464 = vpop.f32.mrf.mxu0
    %1465 = vdwg.mxu0
    %v1466 = vadd.f32 %v1379, %v1419
    %v1467 = vadd.f32 %v1380, %v1421
    %v1468 = vadd.f32 %v1381, %v1460
    %v1469 = vadd.f32 %v1382, %v1462
    %v1470 = vxor.u32 %v1466, 2147483648
    %v1471 = vxor.u32 %v1467, 2147483648
    %v1472 = vxor.u32 %v1468, 2147483648
    %v1473 = vmul.f32 %v1470, 1.442695
    %v1474 = vpow.pop %v1473
    %v1475 = vmul.f32 %v1471, 1.442695
    %v1476 = vpow.pop %v1475
    %v1477 = vmul.f32 %v1472, 1.442695
    %v1478 = vpow.pop %v1477
    %v1479 = vadd.f32 %v1474, 1.0
    %v1480 = vadd.f32 %v1476, 1.0
    %v1481 = vadd.f32 %v1478, 1.0
    %v1482 = vrcp.pop %v1479
    %v1483 = vmul.f32 1.0, %v1482
    %v1484 = vrcp.pop %v1480
    %v1485 = vmul.f32 1.0, %v1484
    %v1486 = vrcp.pop %v1481
    %v1487 = vmul.f32 1.0, %v1486
    %v1488 = vtanh.pop %v1469
    %v1489 = vmul.f32 %v1485, %v1373
    %v1490 = vmul.f32 %v1483, %v1488
    %v1491 = vadd.f32 %v1489, %v1490
    %v1492 = vtanh.pop %v1491
    %v1493 = vmul.f32 %v1487, %v1492
    %s1494 = smul.u32 5, 4
    %s1495 = smul.addr %s1494, 8
    %s1496 = scalar_lea.vmem [#allocation2], %s1495
    %v1497 = vld [vmem:[%s1496] sm:$0xff]
    %v1498 = vld [vmem:[%s1496 + $0x8] sm:$0xff]
    %v1499 = vld [vmem:[%s1496 + $0x10] sm:$0xff]
    %v1500 = vld [vmem:[%s1496 + $0x18] sm:$0xff]
    %v1501 = vpack.c.bf16 %v1493, %v1493
    %1502 = vmatprep.subr.bf16.mxu0 %v877
    %1503 = vmatpush1.bf16.msra.mxu0 %v876
    %1504 = vmatprep.subr.bf16.mxu0 %v873
    %1505 = vmatpush1.bf16.msra.mxu0 %v872
    %1506 = vmatprep.subr.bf16.mxu0 %v869
    %1507 = vmatpush1.bf16.msra.mxu0 %v868
    %1508 = vmatprep.subr.bf16.mxu0 %v865
    %1509 = vmatpush1.bf16.msra.mxu0 %v864
    %1510 = vmatprep.subr.bf16.mxu0 %v861
    %1511 = vmatpush1.bf16.msra.mxu0 %v860
    %1512 = vmatprep.subr.bf16.mxu0 %v857
    %1513 = vmatpush1.bf16.msra.mxu0 %v856
    %1514 = vmatprep.subr.bf16.mxu0 %v853
    %1515 = vmatpush1.bf16.msra.mxu0 %v852
    %1516 = vmatprep.subr.bf16.mxu0 %v849
    %1517 = vmatpush1.bf16.msra.mxu0 %v848
    %1518 = vmatprep.subr.bf16.mxu0 0
    %1519 = vmatpush2.bf16.msra.mxu0 0
    %1520 = vmatprep.subr.bf16.mxu0 0
    %1521 = vmatpush2.bf16.msra.mxu0 0
    %1522 = vmatprep.subr.bf16.mxu0 0
    %1523 = vmatpush2.bf16.msra.mxu0 0
    %1524 = vmatprep.subr.bf16.mxu0 0
    %1525 = vmatpush2.bf16.msra.mxu0 0
    %1526 = vmatprep.subr.bf16.mxu0 0
    %1527 = vmatpush2.bf16.msra.mxu0 0
    %1528 = vmatprep.subr.bf16.mxu0 0
    %1529 = vmatpush2.bf16.msra.mxu0 0
    %1530 = vmatprep.subr.bf16.mxu0 0
    %1531 = vmatpush2.bf16.msra.mxu0 0
    %1532 = vmatprep.subr.bf16.mxu0 0
    %1533 = vmatpush2.bf16.msra.mxu0 0
    %1534 = vmatprep.mubr.bf16.mxu0 0
    %1535 = vmatmul.mubr.bf16.gmra.mxu0 %v1501
    %v1536 = vpop.f32.mrf.mxu0
    %v1537 = vadd.f32 0.0, %v1536
    %v1538 = vpop.f32.mrf.mxu0
    %v1539 = vadd.f32 0.0, %v1538
    %v1540 = vpop.f32.mrf.mxu0
    %v1541 = vpop.f32.mrf.mxu0
    %1542 = vdwg.mxu0
    %1543 = vmatprep.subr.bf16.mxu0 %v879
    %1544 = vmatpush1.bf16.msra.mxu0 %v878
    %1545 = vmatprep.subr.bf16.mxu0 %v875
    %1546 = vmatpush1.bf16.msra.mxu0 %v874
    %1547 = vmatprep.subr.bf16.mxu0 %v871
    %1548 = vmatpush1.bf16.msra.mxu0 %v870
    %1549 = vmatprep.subr.bf16.mxu0 %v867
    %1550 = vmatpush1.bf16.msra.mxu0 %v866
    %1551 = vmatprep.subr.bf16.mxu0 %v863
    %1552 = vmatpush1.bf16.msra.mxu0 %v862
    %1553 = vmatprep.subr.bf16.mxu0 %v859
    %1554 = vmatpush1.bf16.msra.mxu0 %v858
    %1555 = vmatprep.subr.bf16.mxu0 %v855
    %1556 = vmatpush1.bf16.msra.mxu0 %v854
    %1557 = vmatprep.subr.bf16.mxu0 %v851
    %1558 = vmatpush1.bf16.msra.mxu0 %v850
    %1559 = vmatprep.subr.bf16.mxu0 0
    %1560 = vmatpush2.bf16.msra.mxu0 0
    %1561 = vmatprep.subr.bf16.mxu0 0
    %1562 = vmatpush2.bf16.msra.mxu0 0
    %1563 = vmatprep.subr.bf16.mxu0 0
    %1564 = vmatpush2.bf16.msra.mxu0 0
    %1565 = vmatprep.subr.bf16.mxu0 0
    %1566 = vmatpush2.bf16.msra.mxu0 0
    %1567 = vmatprep.subr.bf16.mxu0 0
    %1568 = vmatpush2.bf16.msra.mxu0 0
    %1569 = vmatprep.subr.bf16.mxu0 0
    %1570 = vmatpush2.bf16.msra.mxu0 0
    %1571 = vmatprep.subr.bf16.mxu0 0
    %1572 = vmatpush2.bf16.msra.mxu0 0
    %1573 = vmatprep.subr.bf16.mxu0 0
    %1574 = vmatpush2.bf16.msra.mxu0 0
    %1575 = vmatprep.mubr.bf16.mxu0 0
    %1576 = vmatmul.mubr.bf16.gmra.mxu0 %v1501
    %v1577 = vpop.f32.mrf.mxu0
    %v1578 = vadd.f32 0.0, %v1577
    %v1579 = vpop.f32.mrf.mxu0
    %v1580 = vadd.f32 0.0, %v1579
    %v1581 = vpop.f32.mrf.mxu0
    %v1582 = vpop.f32.mrf.mxu0
    %1583 = vdwg.mxu0
    %v1584 = vadd.f32 %v1497, %v1537
    %v1585 = vadd.f32 %v1498, %v1539
    %v1586 = vadd.f32 %v1499, %v1578
    %v1587 = vadd.f32 %v1500, %v1580
    %v1588 = vxor.u32 %v1584, 2147483648
    %v1589 = vxor.u32 %v1585, 2147483648
    %v1590 = vxor.u32 %v1586, 2147483648
    %v1591 = vmul.f32 %v1588, 1.442695
    %v1592 = vpow.pop %v1591
    %v1593 = vmul.f32 %v1589, 1.442695
    %v1594 = vpow.pop %v1593
    %v1595 = vmul.f32 %v1590, 1.442695
    %v1596 = vpow.pop %v1595
    %v1597 = vadd.f32 %v1592, 1.0
    %v1598 = vadd.f32 %v1594, 1.0
    %v1599 = vadd.f32 %v1596, 1.0
    %v1600 = vrcp.pop %v1597
    %v1601 = vmul.f32 1.0, %v1600
    %v1602 = vrcp.pop %v1598
    %v1603 = vmul.f32 1.0, %v1602
    %v1604 = vrcp.pop %v1599
    %v1605 = vmul.f32 1.0, %v1604
    %v1606 = vtanh.pop %v1587
    %v1607 = vmul.f32 %v1603, %v1491
    %v1608 = vmul.f32 %v1601, %v1606
    %v1609 = vadd.f32 %v1607, %v1608
    %v1610 = vtanh.pop %v1609
    %v1611 = vmul.f32 %v1605, %v1610
    %s1612 = smul.u32 6, 4
    %s1613 = smul.addr %s1612, 8
    %s1614 = scalar_lea.vmem [#allocation2], %s1613
    %v1615 = vld [vmem:[%s1614] sm:$0xff]
    %v1616 = vld [vmem:[%s1614 + $0x8] sm:$0xff]
    %v1617 = vld [vmem:[%s1614 + $0x10] sm:$0xff]
    %v1618 = vld [vmem:[%s1614 + $0x18] sm:$0xff]
    %v1619 = vpack.c.bf16 %v1611, %v1611
    %1620 = vmatprep.subr.bf16.mxu0 %v877
    %1621 = vmatpush1.bf16.msra.mxu0 %v876
    %1622 = vmatprep.subr.bf16.mxu0 %v873
    %1623 = vmatpush1.bf16.msra.mxu0 %v872
    %1624 = vmatprep.subr.bf16.mxu0 %v869
    %1625 = vmatpush1.bf16.msra.mxu0 %v868
    %1626 = vmatprep.subr.bf16.mxu0 %v865
    %1627 = vmatpush1.bf16.msra.mxu0 %v864
    %1628 = vmatprep.subr.bf16.mxu0 %v861
    %1629 = vmatpush1.bf16.msra.mxu0 %v860
    %1630 = vmatprep.subr.bf16.mxu0 %v857
    %1631 = vmatpush1.bf16.msra.mxu0 %v856
    %1632 = vmatprep.subr.bf16.mxu0 %v853
    %1633 = vmatpush1.bf16.msra.mxu0 %v852
    %1634 = vmatprep.subr.bf16.mxu0 %v849
    %1635 = vmatpush1.bf16.msra.mxu0 %v848
    %1636 = vmatprep.subr.bf16.mxu0 0
    %1637 = vmatpush2.bf16.msra.mxu0 0
    %1638 = vmatprep.subr.bf16.mxu0 0
    %1639 = vmatpush2.bf16.msra.mxu0 0
    %1640 = vmatprep.subr.bf16.mxu0 0
    %1641 = vmatpush2.bf16.msra.mxu0 0
    %1642 = vmatprep.subr.bf16.mxu0 0
    %1643 = vmatpush2.bf16.msra.mxu0 0
    %1644 = vmatprep.subr.bf16.mxu0 0
    %1645 = vmatpush2.bf16.msra.mxu0 0
    %1646 = vmatprep.subr.bf16.mxu0 0
    %1647 = vmatpush2.bf16.msra.mxu0 0
    %1648 = vmatprep.subr.bf16.mxu0 0
    %1649 = vmatpush2.bf16.msra.mxu0 0
    %1650 = vmatprep.subr.bf16.mxu0 0
    %1651 = vmatpush2.bf16.msra.mxu0 0
    %1652 = vmatprep.mubr.bf16.mxu0 0
    %1653 = vmatmul.mubr.bf16.gmra.mxu0 %v1619
    %v1654 = vpop.f32.mrf.mxu0
    %v1655 = vadd.f32 0.0, %v1654
    %v1656 = vpop.f32.mrf.mxu0
    %v1657 = vadd.f32 0.0, %v1656
    %v1658 = vpop.f32.mrf.mxu0
    %v1659 = vpop.f32.mrf.mxu0
    %1660 = vdwg.mxu0
    %1661 = vmatprep.subr.bf16.mxu0 %v879
    %1662 = vmatpush1.bf16.msra.mxu0 %v878
    %1663 = vmatprep.subr.bf16.mxu0 %v875
    %1664 = vmatpush1.bf16.msra.mxu0 %v874
    %1665 = vmatprep.subr.bf16.mxu0 %v871
    %1666 = vmatpush1.bf16.msra.mxu0 %v870
    %1667 = vmatprep.subr.bf16.mxu0 %v867
    %1668 = vmatpush1.bf16.msra.mxu0 %v866
    %1669 = vmatprep.subr.bf16.mxu0 %v863
    %1670 = vmatpush1.bf16.msra.mxu0 %v862
    %1671 = vmatprep.subr.bf16.mxu0 %v859
    %1672 = vmatpush1.bf16.msra.mxu0 %v858
    %1673 = vmatprep.subr.bf16.mxu0 %v855
    %1674 = vmatpush1.bf16.msra.mxu0 %v854
    %1675 = vmatprep.subr.bf16.mxu0 %v851
    %1676 = vmatpush1.bf16.msra.mxu0 %v850
    %1677 = vmatprep.subr.bf16.mxu0 0
    %1678 = vmatpush2.bf16.msra.mxu0 0
    %1679 = vmatprep.subr.bf16.mxu0 0
    %1680 = vmatpush2.bf16.msra.mxu0 0
    %1681 = vmatprep.subr.bf16.mxu0 0
    %1682 = vmatpush2.bf16.msra.mxu0 0
    %1683 = vmatprep.subr.bf16.mxu0 0
    %1684 = vmatpush2.bf16.msra.mxu0 0
    %1685 = vmatprep.subr.bf16.mxu0 0
    %1686 = vmatpush2.bf16.msra.mxu0 0
    %1687 = vmatprep.subr.bf16.mxu0 0
    %1688 = vmatpush2.bf16.msra.mxu0 0
    %1689 = vmatprep.subr.bf16.mxu0 0
    %1690 = vmatpush2.bf16.msra.mxu0 0
    %1691 = vmatprep.subr.bf16.mxu0 0
    %1692 = vmatpush2.bf16.msra.mxu0 0
    %1693 = vmatprep.mubr.bf16.mxu0 0
    %1694 = vmatmul.mubr.bf16.gmra.mxu0 %v1619
    %v1695 = vpop.f32.mrf.mxu0
    %v1696 = vadd.f32 0.0, %v1695
    %v1697 = vpop.f32.mrf.mxu0
    %v1698 = vadd.f32 0.0, %v1697
    %v1699 = vpop.f32.mrf.mxu0
    %v1700 = vpop.f32.mrf.mxu0
    %1701 = vdwg.mxu0
    %v1702 = vadd.f32 %v1615, %v1655
    %v1703 = vadd.f32 %v1616, %v1657
    %v1704 = vadd.f32 %v1617, %v1696
    %v1705 = vadd.f32 %v1618, %v1698
    %v1706 = vxor.u32 %v1702, 2147483648
    %v1707 = vxor.u32 %v1703, 2147483648
    %v1708 = vxor.u32 %v1704, 2147483648
    %v1709 = vmul.f32 %v1706, 1.442695
    %v1710 = vpow.pop %v1709
    %v1711 = vmul.f32 %v1707, 1.442695
    %v1712 = vpow.pop %v1711
    %v1713 = vmul.f32 %v1708, 1.442695
    %v1714 = vpow.pop %v1713
    %v1715 = vadd.f32 %v1710, 1.0
    %v1716 = vadd.f32 %v1712, 1.0
    %v1717 = vadd.f32 %v1714, 1.0
    %v1718 = vrcp.pop %v1715
    %v1719 = vmul.f32 1.0, %v1718
    %v1720 = vrcp.pop %v1716
    %v1721 = vmul.f32 1.0, %v1720
    %v1722 = vrcp.pop %v1717
    %v1723 = vmul.f32 1.0, %v1722
    %v1724 = vtanh.pop %v1705
    %v1725 = vmul.f32 %v1721, %v1609
    %v1726 = vmul.f32 %v1719, %v1724
    %v1727 = vadd.f32 %v1725, %v1726
    %v1728 = vtanh.pop %v1727
    %v1729 = vmul.f32 %v1723, %v1728
    %s1730 = smul.u32 7, 4
    %s1731 = smul.addr %s1730, 8
    %s1732 = scalar_lea.vmem [#allocation2], %s1731
    %v1733 = vld [vmem:[%s1732] sm:$0xff]
    %v1734 = vld [vmem:[%s1732 + $0x8] sm:$0xff]
    %v1735 = vld [vmem:[%s1732 + $0x10] sm:$0xff]
    %v1736 = vld [vmem:[%s1732 + $0x18] sm:$0xff]
    %v1737 = vpack.c.bf16 %v1729, %v1729
    %1738 = vmatprep.subr.bf16.mxu0 %v877
    %1739 = vmatpush1.bf16.msra.mxu0 %v876
    %1740 = vmatprep.subr.bf16.mxu0 %v873
    %1741 = vmatpush1.bf16.msra.mxu0 %v872
    %1742 = vmatprep.subr.bf16.mxu0 %v869
    %1743 = vmatpush1.bf16.msra.mxu0 %v868
    %1744 = vmatprep.subr.bf16.mxu0 %v865
    %1745 = vmatpush1.bf16.msra.mxu0 %v864
    %1746 = vmatprep.subr.bf16.mxu0 %v861
    %1747 = vmatpush1.bf16.msra.mxu0 %v860
    %1748 = vmatprep.subr.bf16.mxu0 %v857
    %1749 = vmatpush1.bf16.msra.mxu0 %v856
    %1750 = vmatprep.subr.bf16.mxu0 %v853
    %1751 = vmatpush1.bf16.msra.mxu0 %v852
    %1752 = vmatprep.subr.bf16.mxu0 %v849
    %1753 = vmatpush1.bf16.msra.mxu0 %v848
    %1754 = vmatprep.subr.bf16.mxu0 0
    %1755 = vmatpush2.bf16.msra.mxu0 0
    %1756 = vmatprep.subr.bf16.mxu0 0
    %1757 = vmatpush2.bf16.msra.mxu0 0
    %1758 = vmatprep.subr.bf16.mxu0 0
    %1759 = vmatpush2.bf16.msra.mxu0 0
    %1760 = vmatprep.subr.bf16.mxu0 0
    %1761 = vmatpush2.bf16.msra.mxu0 0
    %1762 = vmatprep.subr.bf16.mxu0 0
    %1763 = vmatpush2.bf16.msra.mxu0 0
    %1764 = vmatprep.subr.bf16.mxu0 0
    %1765 = vmatpush2.bf16.msra.mxu0 0
    %1766 = vmatprep.subr.bf16.mxu0 0
    %1767 = vmatpush2.bf16.msra.mxu0 0
    %1768 = vmatprep.subr.bf16.mxu0 0
    %1769 = vmatpush2.bf16.msra.mxu0 0
    %1770 = vmatprep.mubr.bf16.mxu0 0
    %1771 = vmatmul.mubr.bf16.gmra.mxu0 %v1737
    %v1772 = vpop.f32.mrf.mxu0
    %v1773 = vadd.f32 0.0, %v1772
    %v1774 = vpop.f32.mrf.mxu0
    %v1775 = vadd.f32 0.0, %v1774
    %v1776 = vpop.f32.mrf.mxu0
    %v1777 = vpop.f32.mrf.mxu0
    %1778 = vdwg.mxu0
    %1779 = vmatprep.subr.bf16.mxu0 %v879
    %1780 = vmatpush1.bf16.msra.mxu0 %v878
    %1781 = vmatprep.subr.bf16.mxu0 %v875
    %1782 = vmatpush1.bf16.msra.mxu0 %v874
    %1783 = vmatprep.subr.bf16.mxu0 %v871
    %1784 = vmatpush1.bf16.msra.mxu0 %v870
    %1785 = vmatprep.subr.bf16.mxu0 %v867
    %1786 = vmatpush1.bf16.msra.mxu0 %v866
    %1787 = vmatprep.subr.bf16.mxu0 %v863
    %1788 = vmatpush1.bf16.msra.mxu0 %v862
    %1789 = vmatprep.subr.bf16.mxu0 %v859
    %1790 = vmatpush1.bf16.msra.mxu0 %v858
    %1791 = vmatprep.subr.bf16.mxu0 %v855
    %1792 = vmatpush1.bf16.msra.mxu0 %v854
    %1793 = vmatprep.subr.bf16.mxu0 %v851
    %1794 = vmatpush1.bf16.msra.mxu0 %v850
    %1795 = vmatprep.subr.bf16.mxu0 0
    %1796 = vmatpush2.bf16.msra.mxu0 0
    %1797 = vmatprep.subr.bf16.mxu0 0
    %1798 = vmatpush2.bf16.msra.mxu0 0
    %1799 = vmatprep.subr.bf16.mxu0 0
    %1800 = vmatpush2.bf16.msra.mxu0 0
    %1801 = vmatprep.subr.bf16.mxu0 0
    %1802 = vmatpush2.bf16.msra.mxu0 0
    %1803 = vmatprep.subr.bf16.mxu0 0
    %1804 = vmatpush2.bf16.msra.mxu0 0
    %1805 = vmatprep.subr.bf16.mxu0 0
    %1806 = vmatpush2.bf16.msra.mxu0 0
    %1807 = vmatprep.subr.bf16.mxu0 0
    %1808 = vmatpush2.bf16.msra.mxu0 0
    %1809 = vmatprep.subr.bf16.mxu0 0
    %1810 = vmatpush2.bf16.msra.mxu0 0
    %1811 = vmatprep.mubr.bf16.mxu0 0
    %1812 = vmatmul.mubr.bf16.gmra.mxu0 %v1737
    %v1813 = vpop.f32.mrf.mxu0
    %v1814 = vadd.f32 0.0, %v1813
    %v1815 = vpop.f32.mrf.mxu0
    %v1816 = vadd.f32 0.0, %v1815
    %v1817 = vpop.f32.mrf.mxu0
    %v1818 = vpop.f32.mrf.mxu0
    %1819 = vdwg.mxu0
    %v1820 = vadd.f32 %v1733, %v1773
    %v1821 = vadd.f32 %v1734, %v1775
    %v1822 = vadd.f32 %v1735, %v1814
    %v1823 = vadd.f32 %v1736, %v1816
    %v1824 = vxor.u32 %v1820, 2147483648
    %v1825 = vxor.u32 %v1821, 2147483648
    %v1826 = vxor.u32 %v1822, 2147483648
    %v1827 = vmul.f32 %v1824, 1.442695
    %v1828 = vpow.pop %v1827
    %v1829 = vmul.f32 %v1825, 1.442695
    %v1830 = vpow.pop %v1829
    %v1831 = vmul.f32 %v1826, 1.442695
    %v1832 = vpow.pop %v1831
    %v1833 = vadd.f32 %v1828, 1.0
    %v1834 = vadd.f32 %v1830, 1.0
    %v1835 = vadd.f32 %v1832, 1.0
    %v1836 = vrcp.pop %v1833
    %v1837 = vmul.f32 1.0, %v1836
    %v1838 = vrcp.pop %v1834
    %v1839 = vmul.f32 1.0, %v1838
    %v1840 = vrcp.pop %v1835
    %v1841 = vmul.f32 1.0, %v1840
    %v1842 = vtanh.pop %v1823
    %v1843 = vmul.f32 %v1839, %v1727
    %v1844 = vmul.f32 %v1837, %v1842
    %v1845 = vadd.f32 %v1843, %v1844
    %v1846 = vtanh.pop %v1845
    %v1847 = vmul.f32 %v1841, %v1846
    %v1848 = vld [vmem:[#allocation9] sm:$0xff]
    %v1849 = vld [vmem:[#allocation9 + $0x8] sm:$0xff]
    %v1850 = vld [vmem:[#allocation9 + $0x10] sm:$0xff]
    %v1851 = vld [vmem:[#allocation9 + $0x18] sm:$0xff]
    %v1852 = vld [vmem:[#allocation9 + $0x20] sm:$0xff]
    %v1853 = vld [vmem:[#allocation9 + $0x28] sm:$0xff]
    %v1854 = vld [vmem:[#allocation9 + $0x30] sm:$0xff]
    %v1855 = vld [vmem:[#allocation9 + $0x38] sm:$0xff]
    %v1856 = vld [vmem:[#allocation9 + $0x40] sm:$0xff]
    %v1857 = vld [vmem:[#allocation9 + $0x48] sm:$0xff]
    %v1858 = vld [vmem:[#allocation9 + $0x50] sm:$0xff]
    %v1859 = vld [vmem:[#allocation9 + $0x58] sm:$0xff]
    %v1860 = vld [vmem:[#allocation9 + $0x60] sm:$0xff]
    %v1861 = vld [vmem:[#allocation9 + $0x68] sm:$0xff]
    %v1862 = vld [vmem:[#allocation9 + $0x70] sm:$0xff]
    %v1863 = vld [vmem:[#allocation9 + $0x78] sm:$0xff]
    %v1864 = vld [vmem:[%s4] sm:$0x1]
    %v1866 = vlaneseq
    %v1867 = vshrl.u32 %v1866, 7
    %v1868 = vsub.s32 0, %v1867
    %v1869 = vrot.slane %v1864, %v1868
    %1871 = vmatprep.subr.mxu0 0.0
    %1872 = vmatpush1.msra.mxu0 %v1863
    %1873 = vmatprep.subr.mxu0 0.0
    %1874 = vmatpush1.msra.mxu0 %v1862
    %1875 = vmatprep.subr.mxu0 0.0
    %1876 = vmatpush1.msra.mxu0 %v1861
    %1877 = vmatprep.subr.mxu0 0.0
    %1878 = vmatpush1.msra.mxu0 %v1860
    %1879 = vmatprep.subr.mxu0 0.0
    %1880 = vmatpush1.msra.mxu0 %v1859
    %1881 = vmatprep.subr.mxu0 0.0
    %1882 = vmatpush1.msra.mxu0 %v1858
    %1883 = vmatprep.subr.mxu0 0.0
    %1884 = vmatpush1.msra.mxu0 %v1857
    %1885 = vmatprep.subr.mxu0 0.0
    %1886 = vmatpush1.msra.mxu0 %v1856
    %1887 = vmatprep.subr.mxu0 0.0
    %1888 = vmatpush1.msra.mxu0 %v1855
    %1889 = vmatprep.subr.mxu0 0.0
    %1890 = vmatpush1.msra.mxu0 %v1854
    %1891 = vmatprep.subr.mxu0 0.0
    %1892 = vmatpush1.msra.mxu0 %v1853
    %1893 = vmatprep.subr.mxu0 0.0
    %1894 = vmatpush1.msra.mxu0 %v1852
    %1895 = vmatprep.subr.mxu0 0.0
    %1896 = vmatpush1.msra.mxu0 %v1851
    %1897 = vmatprep.subr.mxu0 0.0
    %1898 = vmatpush1.msra.mxu0 %v1850
    %1899 = vmatprep.subr.mxu0 0.0
    %1900 = vmatpush1.msra.mxu0 %v1849
    %1901 = vmatprep.subr.mxu0 0.0
    %1902 = vmatpush1.msra.mxu0 %v1848
    %1903 = vmatprep.subr.mxu0 0.0
    %1904 = vmatpush2.msra.mxu0 0.0
    %1905 = vmatprep.subr.mxu0 0.0
    %1906 = vmatpush2.msra.mxu0 0.0
    %1907 = vmatprep.subr.mxu0 0.0
    %1908 = vmatpush2.msra.mxu0 0.0
    %1909 = vmatprep.subr.mxu0 0.0
    %1910 = vmatpush2.msra.mxu0 0.0
    %1911 = vmatprep.subr.mxu0 0.0
    %1912 = vmatpush2.msra.mxu0 0.0
    %1913 = vmatprep.subr.mxu0 0.0
    %1914 = vmatpush2.msra.mxu0 0.0
    %1915 = vmatprep.subr.mxu0 0.0
    %1916 = vmatpush2.msra.mxu0 0.0
    %1917 = vmatprep.subr.mxu0 0.0
    %1918 = vmatpush2.msra.mxu0 0.0
    %1919 = vmatprep.subr.mxu0 0.0
    %1920 = vmatpush2.msra.mxu0 0.0
    %1921 = vmatprep.subr.mxu0 0.0
    %1922 = vmatpush2.msra.mxu0 0.0
    %1923 = vmatprep.subr.mxu0 0.0
    %1924 = vmatpush2.msra.mxu0 0.0
    %1925 = vmatprep.subr.mxu0 0.0
    %1926 = vmatpush2.msra.mxu0 0.0
    %1927 = vmatprep.subr.mxu0 0.0
    %1928 = vmatpush2.msra.mxu0 0.0
    %1929 = vmatprep.subr.mxu0 0.0
    %1930 = vmatpush2.msra.mxu0 0.0
    %1931 = vmatprep.subr.mxu0 0.0
    %1932 = vmatpush2.msra.mxu0 0.0
    %1933 = vmatprep.subr.mxu0 0.0
    %1934 = vmatpush2.msra.mxu0 0.0
    %1935 = vmatprep.mubr.f32.mxu0 0.0
    %1936 = vmatmul.mubr.f32.gmra.mxu0 %v1847
    %v1937 = vpop.f32.mrf.mxu0
    %v1938 = vadd.f32 %v1869, %v1937
    %v1939 = vpop.f32.mrf.mxu0
    %1940 = vdwg.mxu0
    %v1941 = vmax.f32 %v1938, 0.0
    %v1942 = vld [vmem:[#allocation11] sm:$0xff]
    %v1943 = vld [vmem:[#allocation11 + $0x8] sm:$0xff]
    %v1944 = vld [vmem:[#allocation11 + $0x10] sm:$0xff]
    %v1945 = vld [vmem:[#allocation11 + $0x18] sm:$0xff]
    %v1946 = vld [vmem:[#allocation11 + $0x20] sm:$0xff]
    %v1947 = vld [vmem:[#allocation11 + $0x28] sm:$0xff]
    %v1948 = vld [vmem:[#allocation11 + $0x30] sm:$0xff]
    %v1949 = vld [vmem:[#allocation11 + $0x38] sm:$0xff]
    %v1950 = vld [vmem:[#allocation11 + $0x40] sm:$0xff]
    %v1951 = vld [vmem:[#allocation11 + $0x48] sm:$0xff]
    %v1952 = vld [vmem:[#allocation11 + $0x50] sm:$0xff]
    %v1953 = vld [vmem:[#allocation11 + $0x58] sm:$0xff]
    %v1954 = vld [vmem:[#allocation11 + $0x60] sm:$0xff]
    %v1955 = vld [vmem:[#allocation11 + $0x68] sm:$0xff]
    %v1956 = vld [vmem:[#allocation11 + $0x70] sm:$0xff]
    %v1957 = vld [vmem:[#allocation11 + $0x78] sm:$0xff]
    %v1958 = vld [vmem:[%s6] sm:$0x1]
    %v1960 = vlaneseq
    %v1961 = vshrl.u32 %v1960, 7
    %v1962 = vsub.s32 0, %v1961
    %v1963 = vrot.slane %v1958, %v1962
    %1965 = vmatprep.subr.mxu0 0.0
    %1966 = vmatpush1.msra.mxu0 %v1957
    %1967 = vmatprep.subr.mxu0 0.0
    %1968 = vmatpush1.msra.mxu0 %v1956
    %1969 = vmatprep.subr.mxu0 0.0
    %1970 = vmatpush1.msra.mxu0 %v1955
    %1971 = vmatprep.subr.mxu0 0.0
    %1972 = vmatpush1.msra.mxu0 %v1954
    %1973 = vmatprep.subr.mxu0 0.0
    %1974 = vmatpush1.msra.mxu0 %v1953
    %1975 = vmatprep.subr.mxu0 0.0
    %1976 = vmatpush1.msra.mxu0 %v1952
    %1977 = vmatprep.subr.mxu0 0.0
    %1978 = vmatpush1.msra.mxu0 %v1951
    %1979 = vmatprep.subr.mxu0 0.0
    %1980 = vmatpush1.msra.mxu0 %v1950
    %1981 = vmatprep.subr.mxu0 0.0
    %1982 = vmatpush1.msra.mxu0 %v1949
    %1983 = vmatprep.subr.mxu0 0.0
    %1984 = vmatpush1.msra.mxu0 %v1948
    %1985 = vmatprep.subr.mxu0 0.0
    %1986 = vmatpush1.msra.mxu0 %v1947
    %1987 = vmatprep.subr.mxu0 0.0
    %1988 = vmatpush1.msra.mxu0 %v1946
    %1989 = vmatprep.subr.mxu0 0.0
    %1990 = vmatpush1.msra.mxu0 %v1945
    %1991 = vmatprep.subr.mxu0 0.0
    %1992 = vmatpush1.msra.mxu0 %v1944
    %1993 = vmatprep.subr.mxu0 0.0
    %1994 = vmatpush1.msra.mxu0 %v1943
    %1995 = vmatprep.subr.mxu0 0.0
    %1996 = vmatpush1.msra.mxu0 %v1942
    %1997 = vmatprep.subr.mxu0 0.0
    %1998 = vmatpush2.msra.mxu0 0.0
    %1999 = vmatprep.subr.mxu0 0.0
    %2000 = vmatpush2.msra.mxu0 0.0
    %2001 = vmatprep.subr.mxu0 0.0
    %2002 = vmatpush2.msra.mxu0 0.0
    %2003 = vmatprep.subr.mxu0 0.0
    %2004 = vmatpush2.msra.mxu0 0.0
    %2005 = vmatprep.subr.mxu0 0.0
    %2006 = vmatpush2.msra.mxu0 0.0
    %2007 = vmatprep.subr.mxu0 0.0
    %2008 = vmatpush2.msra.mxu0 0.0
    %2009 = vmatprep.subr.mxu0 0.0
    %2010 = vmatpush2.msra.mxu0 0.0
    %2011 = vmatprep.subr.mxu0 0.0
    %2012 = vmatpush2.msra.mxu0 0.0
    %2013 = vmatprep.subr.mxu0 0.0
    %2014 = vmatpush2.msra.mxu0 0.0
    %2015 = vmatprep.subr.mxu0 0.0
    %2016 = vmatpush2.msra.mxu0 0.0
    %2017 = vmatprep.subr.mxu0 0.0
    %2018 = vmatpush2.msra.mxu0 0.0
    %2019 = vmatprep.subr.mxu0 0.0
    %2020 = vmatpush2.msra.mxu0 0.0
    %2021 = vmatprep.subr.mxu0 0.0
    %2022 = vmatpush2.msra.mxu0 0.0
    %2023 = vmatprep.subr.mxu0 0.0
    %2024 = vmatpush2.msra.mxu0 0.0
    %2025 = vmatprep.subr.mxu0 0.0
    %2026 = vmatpush2.msra.mxu0 0.0
    %2027 = vmatprep.subr.mxu0 0.0
    %2028 = vmatpush2.msra.mxu0 0.0
    %2029 = vmatprep.mubr.f32.mxu0 0.0
    %2030 = vmatmul.mubr.f32.gmra.mxu0 %v1941
    %v2031 = vpop.f32.mrf.mxu0
    %v2032 = vadd.f32 %v1963, %v2031
    %v2033 = vpop.f32.mrf.mxu0
    %2034 = vdwg.mxu0
    %v2035 = vmax.f32 %v2032, 0.0
    %v2036 = vld [vmem:[%s7] sm:$0x1]
    %v2038 = vlaneseq
    %v2039 = vshrl.u32 %v2038, 7
    %v2040 = vsub.s32 0, %v2039
    %v2041 = vrot.slane %v2036, %v2040
    %v2043 = vmul.f32 %v2035, %v2041
    %2044 = vadd.xlane.f32.xlu0 %v2043
    %v2045 = vpop.xlane.xlu0 %2044
    %v2046 = vld [vmem:[#allocation3] sm:$0x1]
    %v2048 = vlaneseq
    %v2049 = vshrl.u32 %v2048, 7
    %v2050 = vsub.s32 0, %v2049
    %v2051 = vrot.slane %v2046, %v2050
    %v2053 = vadd.f32 %v2045, %v2051
    %v2054 = vxor.u32 %v2053, 2147483648
    %v2055 = vmul.f32 %v2054, 1.442695
    %v2056 = vpow.pop %v2055
    %v2057 = vadd.f32 %v2056, 1.0
    %v2058 = vrcp.pop %v2057
    %v2059 = vmul.f32 1.0, %v2058
    %vm2060 = vcmask 7168
    %2061 = vst.msk [vmem:[%s9] sm:$0xff] %vm2060, %v2059
    // Predicated region
    $region58: #{tpu_custom_call.1} parent=1 // pred_check
      _
    $region59: #{tpu_custom_call.1} parent=1 // pred_check_branch
      %2063 = sbr.rel (0) target = $region61
    $region60: #{tpu_custom_call.1} parent=1 // pred_region
      _
    $region61: #{tpu_custom_call.1} parent=1 // pred_fallthru
      _
    // Predicated region
    $region62: #{tpu_custom_call.1} parent=1 // pred_check
      _
    $region63: #{tpu_custom_call.1} parent=1 // pred_check_branch
      %2065 = sbr.rel (0) target = $region65
    $region64: #{tpu_custom_call.1} parent=1 // pred_region
      _
    $region65: #{tpu_custom_call.1} parent=1 // pred_fallthru
      _
    %2066 = vsyncpa [#allocation5], 1
    %2067 = vsyncpa [#allocation7], 1
    %2068 = vsyncpa [#allocation10], 1

</llo_original>
